<compile_context>
chip_gen: v6e
topology: v6e:2x2x1
jax: 0.10.0
libtpu: 0.0.40
codegen_flags: <defaults>
</compile_context>

<pallas_src>
import math
from functools import lru_cache, partial

import jax
import jax.numpy as jnp
from jax.experimental import pallas as pl
from jax.experimental.pallas import tpu as pltpu


# ----------------------------------------------------------------------------
# Fused conv_1x1(+bias) -> pad -> conv_3x3(+bias) kernel (one row slab per step)
# ----------------------------------------------------------------------------
def _neck_fused_kernel(x_ref, halo_ref, w1_ref, b1_ref, w3_ref, b3_ref,
                       o_ref, tpad_ref, *, j_axis):
    # x_ref    : (1, 1, th*W, Cin)   this block's rows, flattened over (row, col)
    # halo_ref : (1, 1, 2*W, Cin)    [top halo row ; bottom halo row] for this block
    # w1_ref   : (Cin, D)            conv_1x1 weight (compute dtype)
    # b1_ref   : (1, D)              conv_1x1 bias   (fp32)
    # w3_ref   : (3, 3*D, D)         conv_3x3 weight, (kh, kw*cin, cout), compute dtype
    # b3_ref   : (1, D)              conv_3x3 bias   (fp32)
    # o_ref    : (1, 1, th*W, D)     output rows, flattened over (row, col)
    # tpad_ref : VMEM (th+2, W, 3*D) width-shifted conv_1x1 activations (compute dtype)
    THp, W, D3 = tpad_ref.shape
    D = D3 // 3
    th = THp - 2
    cdt = tpad_ref.dtype
    j = pl.program_id(j_axis)
    nj = pl.num_programs(j_axis)

    w1 = w1_ref[...]
    b1 = b1_ref[...]

    def shift3(t):
        # t: (R, W, D) f32 -> (R, W, 3*D) compute-dtype, where channel block dw
        # holds the activation of column c + dw - 1 (zeros outside the width).
        r = t.shape[0]
        z = jnp.zeros((r, 1, D), jnp.float32)
        left = jnp.concatenate([z, t[:, :W - 1, :]], axis=1)   # col c <- t[:, c-1]
        right = jnp.concatenate([t[:, 1:, :], z], axis=1)      # col c <- t[:, c+1]
        return jnp.concatenate([left, t, right], axis=-1).astype(cdt)

    # ---- conv_1x1 on the block's own rows: one MXU matmul, fp32 acc + bias ----
    t_main = jnp.dot(x_ref[0, 0].astype(cdt), w1,
                     preferred_element_type=jnp.float32) + b1         # (th*W, D) f32
    tpad_ref[1:th + 1] = shift3(t_main.reshape(th, W, D))

    # ---- conv_1x1 on the two halo rows; at the image top/bottom the halo is the
    # conv padding (zeros), not conv_1x1(0) + bias. --------------------------------
    t_halo = (jnp.dot(halo_ref[0, 0].astype(cdt), w1,
                      preferred_element_type=jnp.float32) + b1).reshape(2, W, D)
    t_top = jnp.where(j == 0, 0.0, t_halo[0:1])
    t_bot = jnp.where(j == nj - 1, 0.0, t_halo[1:2])
    tpad_ref[0:1] = shift3(t_top)
    tpad_ref[THp - 1:THp] = shift3(t_bot)

    # ---- conv_3x3: 3 fused matmuls (K = 3*D, one per kernel row).  The lhs for
    # each row is a FREE leading-dim slice of the width-shifted scratch. ----------
    acc = jnp.dot(tpad_ref[0:th].reshape(th * W, D3), w3_ref[0],
                  preferred_element_type=jnp.float32)
    for dh in (1, 2):
        acc = acc + jnp.dot(tpad_ref[dh:dh + th].reshape(th * W, D3), w3_ref[dh],
                            preferred_element_type=jnp.float32)

    o_ref[0, 0] = (acc + b3_ref[...]).astype(o_ref.dtype)


def _largest_divisor_leq(n, cap):
    for d in range(min(n, cap), 0, -1):
        if n % d == 0:
            return d
    return 1


def _vmem_ceiling_bytes():
    # ~75% of physical VMEM: ~48 MiB on v7x (64 MiB/TC), ~96 MiB on v5e/v6e (128 MiB).
    try:
        cap = int(pltpu.get_tpu_info().vmem_capacity_bytes)
    except Exception:
        cap = 64 << 20
    return (cap * 3) // 4


def _need_bytes(th, W, Cin, D, in_b, out_b, cd_b):
    THp = th + 2
    return int(2 * (th + 2) * W * Cin * in_b          # double-buffered input + halo
               + 2 * th * W * D * out_b               # double-buffered output
               + 2 * (Cin * D + 9 * D * D) * cd_b     # double-buffered weights
               + 8 * D                                # biases
               + THp * W * 3 * D * cd_b               # shifted-activation scratch
               + 6 * th * W * D * 4)                  # in-kernel f32 temporaries


def neck_conv_pallas(x_nhwc, w1, b1, w3, b3, *, compute_dtype=jnp.float32,
                     row_tile=32):
    """conv_1x1(+bias) -> conv_3x3(pad=1, +bias), NHWC, one fused pallas_call."""
    B, H, W, Cin = x_nhwc.shape
    D = w1.shape[1]
    # TODO(synk): support W % 8 != 0 (needs width padding + masked output stores).
    assert W % 8 == 0, "feature-map width must be a multiple of 8"

    in_b = jnp.dtype(x_nhwc.dtype).itemsize
    cd_b = jnp.dtype(compute_dtype).itemsize
    out_dtype = x_nhwc.dtype
    out_b = jnp.dtype(out_dtype).itemsize

    # Pick the row tile from the VMEM budget (big tiles amortize halo + per-step
    # overhead; shrink if the estimate would not fit the per-generation ceiling).
    ceiling = _vmem_ceiling_bytes()
    th = _largest_divisor_leq(H, row_tile)
    while th > 8 and _need_bytes(th, W, Cin, D, in_b, out_b, cd_b) > (ceiling * 3) // 4:
        th = _largest_divisor_leq(H, max(th // 2, 1))
    nb = H // th
    THp = th + 2

    # Main rows: a free reshape of the input -- NO overlapping-slab materialization.
    x_main = x_nhwc.reshape(B, nb, th * W, Cin)

    # Halo rows: gather only 2 rows per block (~2/th of one input pass).
    zrow = jnp.zeros((B, 1, W, Cin), x_nhwc.dtype)
    tops = x_nhwc[:, th - 1::th][:, :nb - 1]            # top halo of blocks 1..nb-1
    bots = x_nhwc[:, th::th][:, :nb - 1]                 # bottom halo of blocks 0..nb-2
    halo = jnp.concatenate(
        [jnp.concatenate([zrow, tops], axis=1)[:, :, None],
         jnp.concatenate([bots, zrow], axis=1)[:, :, None]], axis=2)
    halo = halo.reshape(B, nb, 2 * W, Cin)

    w1c = w1.astype(compute_dtype)                       # (Cin, D)
    w3c = w3.reshape(3, 3 * D, D).astype(compute_dtype)  # (kh, kw*cin, cout)
    b1f = b1.reshape(1, D).astype(jnp.float32)
    b3f = b3.reshape(1, D).astype(jnp.float32)

    # Grid: larger axis first so a 2-TC (v7x) megacore split is well balanced.
    if nb >= B:
        grid = (nb, B)
        j_axis = 0
        to_bj = lambda i0, i1: (i1, i0)
    else:
        grid = (B, nb)
        j_axis = 1
        to_bj = lambda i0, i1: (i0, i1)

    def im_bj(i0, i1):
        b, j = to_bj(i0, i1)
        return (b, j, 0, 0)

    need = _need_bytes(th, W, Cin, D, in_b, out_b, cd_b)
    vmem_limit = int(min(max(2 * need, 32 << 20), ceiling))

    # TODO(synk): single-buffer the grid-invariant weight specs with
    # pipeline_mode=pl.Buffered(1) once buffer_count=1 is supported here.
    y = pl.pallas_call(
        partial(_neck_fused_kernel, j_axis=j_axis),
        out_shape=jax.ShapeDtypeStruct((B, nb, th * W, D), out_dtype),
        grid=grid,
        in_specs=[
            pl.BlockSpec((1, 1, th * W, Cin), im_bj),
            pl.BlockSpec((1, 1, 2 * W, Cin), im_bj),
            pl.BlockSpec((Cin, D), lambda i0, i1: (0, 0)),
            pl.BlockSpec((1, D), lambda i0, i1: (0, 0)),
            pl.BlockSpec((3, 3 * D, D), lambda i0, i1: (0, 0, 0)),
            pl.BlockSpec((1, D), lambda i0, i1: (0, 0)),
        ],
        out_specs=pl.BlockSpec((1, 1, th * W, D), im_bj),
        scratch_shapes=[pltpu.VMEM((THp, W, 3 * D), compute_dtype)],
        compiler_params=pltpu.CompilerParams(
            dimension_semantics=("parallel", "parallel"),
            vmem_limit_bytes=vmem_limit),
    )(x_main, halo, w1c, b1f, w3c, b3f)

    return y.reshape(B, H, W, D)             # (nb, th*W) -> (H, W), row-major (free)


# ----------------------------------------------------------------------------
# Positional encoding (PositionEmbeddingSine) -- parameter-free, shape-only.
# Cached per (H, W); batch broadcast is done (lazily) by the caller.
# ----------------------------------------------------------------------------
@lru_cache(maxsize=8)
def _position_embedding_sine(H, W, num_pos_feats, temperature, dtype_name):
    assert num_pos_feats % 2 == 0
    npf = num_pos_feats // 2
    scale = 2.0 * math.pi
    eps = 1e-6

    y_embed = jnp.arange(1, H + 1, dtype=jnp.float32)[:, None] * jnp.ones((1, W), jnp.float32)
    x_embed = jnp.ones((H, 1), jnp.float32) * jnp.arange(1, W + 1, dtype=jnp.float32)[None, :]
    y_embed = y_embed / (y_embed[-1:, :] + eps) * scale
    x_embed = x_embed / (x_embed[:, -1:] + eps) * scale

    dim_t = jnp.arange(npf, dtype=jnp.float32)
    dim_t = temperature ** (2.0 * (dim_t // 2) / npf)

    pos_x = x_embed[:, :, None] / dim_t
    pos_y = y_embed[:, :, None] / dim_t
    pos_x = jnp.stack((jnp.sin(pos_x[:, :, 0::2]), jnp.cos(pos_x[:, :, 1::2])),
                      axis=3).reshape(H, W, npf)
    pos_y = jnp.stack((jnp.sin(pos_y[:, :, 0::2]), jnp.cos(pos_y[:, :, 1::2])),
                      axis=3).reshape(H, W, npf)
    pos = jnp.concatenate([pos_y, pos_x], axis=-1)          # (H, W, d_model)
    pos = jnp.transpose(pos, (2, 0, 1))                     # (d_model, H, W)
    return pos.astype(jnp.dtype(dtype_name))


# ----------------------------------------------------------------------------
# ViTDetNeck forward (neck_norm=None -> convs have bias, no LayerNorm2d)
# ----------------------------------------------------------------------------
def vitdet_neck_forward(xs, params, d_model, *, compute_dtype=jnp.float32,
                        channels_last=False, broadcast_pos=True):
    assert len(xs) == len(params["convs"])
    out = [None] * len(params["convs"])
    pos = [None] * len(params["convs"])

    x = xs[0]                                   # NCHW (B, Cin, H, W), as in PyTorch
    p = params["convs"][0]
    B, Cin, H, W = x.shape

    x_nhwc = jnp.transpose(x, (0, 2, 3, 1))     # single NCHW -> NHWC relayout
    y = neck_conv_pallas(x_nhwc, p["w1"], p["b1"], p["w3"], p["b3"],
                         compute_dtype=compute_dtype)
    if channels_last:
        x_out = y                               # (B, H, W, D): saves one full HBM pass
    else:
        x_out = jnp.transpose(y, (0, 3, 1, 2))  # NCHW, matching the PyTorch module

    pe = _position_embedding_sine(H, W, d_model, 10000.0, x_out.dtype.name)
    if broadcast_pos:
        pe = jnp.broadcast_to(pe[None], (B, d_model, H, W))
    out[0] = x_out
    pos[0] = pe
    return out, pos


# ----------------------------------------------------------------------------
# Deterministic parameter init (synthetic; shapes match nn.Conv2d in __init__)
# ----------------------------------------------------------------------------
def init_params(key, backbone_channel_list, d_model):
    convs = []
    for dim in backbone_channel_list:
        key, k1, k2, k3, k4 = jax.random.split(key, 5)
        convs.append({
            # conv_1x1: torch weight (D, dim, 1, 1) -> stored as (dim, D)
            "w1": 0.1 * jax.random.normal(k1, (dim, d_model), jnp.float32),
            "b1": 0.1 * jax.random.normal(k2, (d_model,), jnp.float32),
            # conv_3x3: torch weight (D, D, 3, 3) -> stored as (kh, kw, cin, cout)
            "w3": 0.1 * jax.random.normal(k3, (3, 3, d_model, d_model), jnp.float32),
            "b3": 0.1 * jax.random.normal(k4, (d_model,), jnp.float32),
        })
    return {"convs": convs}


# ----------------------------------------------------------------------------
# Pure-JAX reference for correctness check
# ----------------------------------------------------------------------------
def ref_forward(x, params, d_model):
    p = params["convs"][0]
    B, Cin, H, W = x.shape
    xh = jnp.transpose(x, (0, 2, 3, 1))
    t = jnp.einsum("bhwc,cd->bhwd", xh, p["w1"]) + p["b1"]
    tp = jnp.pad(t, ((0, 0), (1, 1), (1, 1), (0, 0)))
    y = jnp.zeros((B, H, W, d_model), jnp.float32)
    for dh in range(3):
        for dw in range(3):
            y = y + jnp.einsum("bhwc,cd->bhwd",
                               tp[:, dh:dh + H, dw:dw + W, :], p["w3"][dh, dw])
    y = y + p["b3"]
    return jnp.transpose(y, (0, 3, 1, 2))


if __name__ == "__main__":
    d_model = 32

    def run_case(B, Cin, H, W, compute_dtype, tol):
        key = jax.random.PRNGKey(0)
        kx, kp = jax.random.split(key)
        x = jax.random.normal(kx, (B, Cin, H, W), jnp.float32)
        params = init_params(kp, [Cin], d_model)
        out, pos = vitdet_neck_forward([x], params, d_model,
                                       compute_dtype=compute_dtype)
        out0 = jax.block_until_ready(out[0])
        pos0 = jax.block_until_ready(pos[0])
        assert out0.shape == (B, d_model, H, W), out0.shape
        assert pos0.shape == (B, d_model, H, W), pos0.shape
        ref = ref_forward(x, params, d_model)
        assert jnp.allclose(out0, ref, atol=tol, rtol=tol), \
            f"mismatch vs reference, max err {jnp.max(jnp.abs(out0 - ref))}"
        return out0

    # Case 1: single row-block per image (batch-major grid), fp32 exact + bf16.
    run_case(2, 4, 16, 16, jnp.float32, 1e-4)
    run_case(2, 4, 16, 16, jnp.bfloat16, 5e-2)
    # Case 2: multiple row-blocks (interior halo rows, row-block-major grid).
    run_case(1, 8, 64, 16, jnp.float32, 1e-4)

    print("KERNEL_OK")
</pallas_src>

<mosaic_0001>
module attributes {stable_mosaic.version = 11 : i64} {
  func.func @_neck_fused_kernel(%arg0: i32, %arg1: i32, %arg2: memref<1x1x256x4xf32, #tpu.memory_space<vmem>>, %arg3: memref<1x1x32x4xf32, #tpu.memory_space<vmem>>, %arg4: memref<4x32xf32, #tpu.memory_space<vmem>>, %arg5: memref<1x32xf32, #tpu.memory_space<vmem>>, %arg6: memref<3x96x32xf32, #tpu.memory_space<vmem>>, %arg7: memref<1x32xf32, #tpu.memory_space<vmem>>, %arg8: memref<1x1x256x32xf32, #tpu.memory_space<vmem>>, %arg9: memref<18x16x96xf32, #tpu.memory_space<vmem>>) attributes {dimension_semantics = [#tpu.dimension_semantics<parallel>, #tpu.dimension_semantics<parallel>], iteration_bounds = array<i64: 2, 1>, scalar_prefetch = 0 : i64, scratch_operands = 1 : i64, tpu.core_type = #tpu.core_type<tc>, window_params = [{transform_indices = @transform_0, window_bounds = array<i64: 1, 1, 256, 4>}, {transform_indices = @transform_1, window_bounds = array<i64: 1, 1, 32, 4>}, {pipeline_mode = #tpu.pipeline_mode<synchronous>, transform_indices = @transform_2, window_bounds = array<i64: 4, 32>}, {pipeline_mode = #tpu.pipeline_mode<synchronous>, transform_indices = @transform_3, window_bounds = array<i64: 1, 32>}, {pipeline_mode = #tpu.pipeline_mode<synchronous>, transform_indices = @transform_4, window_bounds = array<i64: 3, 96, 32>}, {pipeline_mode = #tpu.pipeline_mode<synchronous>, transform_indices = @transform_5, window_bounds = array<i64: 1, 32>}, {transform_indices = @transform_6, window_bounds = array<i64: 1, 1, 256, 32>}]} {
    %c0 = arith.constant 0 : index
    %c0_0 = arith.constant 0 : index
    %0 = vector.load %arg4[%c0, %c0_0] : memref<4x32xf32, #tpu.memory_space<vmem>>, vector<4x32xf32>
    %c0_1 = arith.constant 0 : index
    %c0_2 = arith.constant 0 : index
    %1 = vector.load %arg5[%c0_1, %c0_2] : memref<1x32xf32, #tpu.memory_space<vmem>>, vector<1x32xf32>
    %c0_3 = arith.constant 0 : index
    %c0_4 = arith.constant 0 : index
    %c0_5 = arith.constant 0 : index
    %c0_6 = arith.constant 0 : index
    %2 = vector.load %arg2[%c0_3, %c0_4, %c0_5, %c0_6] : memref<1x1x256x4xf32, #tpu.memory_space<vmem>>, vector<1x1x256x4xf32>
    %3 = vector.shape_cast %2 : vector<1x1x256x4xf32> to vector<256x4xf32>
    %cst = arith.constant dense<0.000000e+00> : vector<256x32xf32>
    %4 = tpu.matmul %3, %0, %cst {dimension_numbers = #tpu.dot_dimension_numbers<[1], [0], [0], [1], [0, 0, 1, 1], [], []>} : vector<256x4xf32>, vector<4x32xf32>, vector<256x32xf32> -> vector<256x32xf32>
    %5 = vector.broadcast %1 : vector<1x32xf32> to vector<256x32xf32>
    %6 = arith.addf %4, %5 : vector<256x32xf32>
    %7 = vector.shape_cast %6 : vector<256x32xf32> to vector<16x16x32xf32>
    %cst_7 = arith.constant 0.000000e+00 : f32
    %8 = vector.broadcast %cst_7 : f32 to vector<16x1x32xf32>
    %9 = vector.extract_strided_slice %7 {offsets = [0, 0, 0], sizes = [16, 15, 32], strides = [1, 1, 1]} : vector<16x16x32xf32> to vector<16x15x32xf32>
    %10 = tpu.concatenate %8, %9 in 1 : vector<16x1x32xf32>, vector<16x15x32xf32> -> vector<16x16x32xf32>
    %11 = vector.extract_strided_slice %7 {offsets = [0, 1, 0], sizes = [16, 15, 32], strides = [1, 1, 1]} : vector<16x16x32xf32> to vector<16x15x32xf32>
    %12 = tpu.concatenate %11, %8 in 1 : vector<16x15x32xf32>, vector<16x1x32xf32> -> vector<16x16x32xf32>
    %13 = tpu.concatenate %10, %7, %12 in 2 : vector<16x16x32xf32>, vector<16x16x32xf32>, vector<16x16x32xf32> -> vector<16x16x96xf32>
    %c1 = arith.constant 1 : index
    %c0_8 = arith.constant 0 : index
    %c0_9 = arith.constant 0 : index
    %14 = vector.load %arg9[%c1, %c0_8, %c0_9] : memref<18x16x96xf32, #tpu.memory_space<vmem>>, vector<16x16x96xf32>
    tpu.vector_store %arg9[%c1, %c0_8, %c0_9], %13 {strides = array<i32>} : memref<18x16x96xf32, #tpu.memory_space<vmem>>, vector<16x16x96xf32>,
    %c0_10 = arith.constant 0 : index
    %c0_11 = arith.constant 0 : index
    %c0_12 = arith.constant 0 : index
    %c0_13 = arith.constant 0 : index
    %15 = vector.load %arg3[%c0_10, %c0_11, %c0_12, %c0_13] : memref<1x1x32x4xf32, #tpu.memory_space<vmem>>, vector<1x1x32x4xf32>
    %16 = vector.shape_cast %15 : vector<1x1x32x4xf32> to vector<32x4xf32>
    %cst_14 = arith.constant dense<0.000000e+00> : vector<32x32xf32>
    %17 = tpu.matmul %16, %0, %cst_14 {dimension_numbers = #tpu.dot_dimension_numbers<[1], [0], [0], [1], [0, 0, 1, 1], [], []>} : vector<32x4xf32>, vector<4x32xf32>, vector<32x32xf32> -> vector<32x32xf32>
    %18 = vector.broadcast %1 : vector<1x32xf32> to vector<32x32xf32>
    %19 = arith.addf %17, %18 : vector<32x32xf32>
    %20 = vector.shape_cast %19 : vector<32x32xf32> to vector<2x16x32xf32>
    %c0_i32 = arith.constant 0 : i32
    %21 = arith.cmpi eq, %arg1, %c0_i32 : i32
    %22 = vector.extract_strided_slice %20 {offsets = [0, 0, 0], sizes = [1, 16, 32], strides = [1, 1, 1]} : vector<2x16x32xf32> to vector<1x16x32xf32>
    %cst_15 = arith.constant 0.000000e+00 : f32
    %23 = vector.broadcast %cst_15 : f32 to vector<1x16x32xf32>
    %24 = arith.select %21, %23, %22 : vector<1x16x32xf32>
    %c0_i32_16 = arith.constant 0 : i32
    %25 = arith.cmpi eq, %arg1, %c0_i32_16 : i32
    %26 = vector.extract_strided_slice %20 {offsets = [1, 0, 0], sizes = [1, 16, 32], strides = [1, 1, 1]} : vector<2x16x32xf32> to vector<1x16x32xf32>
    %cst_17 = arith.constant 0.000000e+00 : f32
    %27 = vector.broadcast %cst_17 : f32 to vector<1x16x32xf32>
    %28 = arith.select %25, %27, %26 : vector<1x16x32xf32>
    %cst_18 = arith.constant 0.000000e+00 : f32
    %29 = vector.broadcast %cst_18 : f32 to vector<1x1x32xf32>
    %30 = vector.extract_strided_slice %24 {offsets = [0, 0, 0], sizes = [1, 15, 32], strides = [1, 1, 1]} : vector<1x16x32xf32> to vector<1x15x32xf32>
    %31 = tpu.concatenate %29, %30 in 1 : vector<1x1x32xf32>, vector<1x15x32xf32> -> vector<1x16x32xf32>
    %32 = vector.extract_strided_slice %24 {offsets = [0, 1, 0], sizes = [1, 15, 32], strides = [1, 1, 1]} : vector<1x16x32xf32> to vector<1x15x32xf32>
    %33 = tpu.concatenate %32, %29 in 1 : vector<1x15x32xf32>, vector<1x1x32xf32> -> vector<1x16x32xf32>
    %34 = tpu.concatenate %31, %24, %33 in 2 : vector<1x16x32xf32>, vector<1x16x32xf32>, vector<1x16x32xf32> -> vector<1x16x96xf32>
    %c0_19 = arith.constant 0 : index
    %c0_20 = arith.constant 0 : index
    %c0_21 = arith.constant 0 : index
    %35 = vector.load %arg9[%c0_19, %c0_20, %c0_21] : memref<18x16x96xf32, #tpu.memory_space<vmem>>, vector<1x16x96xf32>
    tpu.vector_store %arg9[%c0_19, %c0_20, %c0_21], %34 {strides = array<i32>} : memref<18x16x96xf32, #tpu.memory_space<vmem>>, vector<1x16x96xf32>,
    %cst_22 = arith.constant 0.000000e+00 : f32
    %36 = vector.broadcast %cst_22 : f32 to vector<1x1x32xf32>
    %37 = vector.extract_strided_slice %28 {offsets = [0, 0, 0], sizes = [1, 15, 32], strides = [1, 1, 1]} : vector<1x16x32xf32> to vector<1x15x32xf32>
    %38 = tpu.concatenate %36, %37 in 1 : vector<1x1x32xf32>, vector<1x15x32xf32> -> vector<1x16x32xf32>
    %39 = vector.extract_strided_slice %28 {offsets = [0, 1, 0], sizes = [1, 15, 32], strides = [1, 1, 1]} : vector<1x16x32xf32> to vector<1x15x32xf32>
    %40 = tpu.concatenate %39, %36 in 1 : vector<1x15x32xf32>, vector<1x1x32xf32> -> vector<1x16x32xf32>
    %41 = tpu.concatenate %38, %28, %40 in 2 : vector<1x16x32xf32>, vector<1x16x32xf32>, vector<1x16x32xf32> -> vector<1x16x96xf32>
    %c17 = arith.constant 17 : index
    %c0_23 = arith.constant 0 : index
    %c0_24 = arith.constant 0 : index
    %42 = vector.load %arg9[%c17, %c0_23, %c0_24] : memref<18x16x96xf32, #tpu.memory_space<vmem>>, vector<1x16x96xf32>
    tpu.vector_store %arg9[%c17, %c0_23, %c0_24], %41 {strides = array<i32>} : memref<18x16x96xf32, #tpu.memory_space<vmem>>, vector<1x16x96xf32>,
    %c0_25 = arith.constant 0 : index
    %c0_26 = arith.constant 0 : index
    %c0_27 = arith.constant 0 : index
    %43 = vector.load %arg9[%c0_25, %c0_26, %c0_27] : memref<18x16x96xf32, #tpu.memory_space<vmem>>, vector<16x16x96xf32>
    %44 = vector.shape_cast %43 : vector<16x16x96xf32> to vector<256x96xf32>
    %c0_28 = arith.constant 0 : index
    %c0_29 = arith.constant 0 : index
    %c0_30 = arith.constant 0 : index
    %45 = vector.load %arg6[%c0_28, %c0_29, %c0_30] : memref<3x96x32xf32, #tpu.memory_space<vmem>>, vector<1x96x32xf32>
    %46 = vector.shape_cast %45 : vector<1x96x32xf32> to vector<96x32xf32>
    %cst_31 = arith.constant dense<0.000000e+00> : vector<256x32xf32>
    %47 = tpu.matmul %44, %46, %cst_31 {dimension_numbers = #tpu.dot_dimension_numbers<[1], [0], [0], [1], [0, 0, 1, 1], [], []>} : vector<256x96xf32>, vector<96x32xf32>, vector<256x32xf32> -> vector<256x32xf32>
    %c1_32 = arith.constant 1 : index
    %c0_33 = arith.constant 0 : index
    %c0_34 = arith.constant 0 : index
    %48 = vector.load %arg9[%c1_32, %c0_33, %c0_34] : memref<18x16x96xf32, #tpu.memory_space<vmem>>, vector<16x16x96xf32>
    %49 = vector.shape_cast %48 : vector<16x16x96xf32> to vector<256x96xf32>
    %c1_35 = arith.constant 1 : index
    %c0_36 = arith.constant 0 : index
    %c0_37 = arith.constant 0 : index
    %50 = vector.load %arg6[%c1_35, %c0_36, %c0_37] : memref<3x96x32xf32, #tpu.memory_space<vmem>>, vector<1x96x32xf32>
    %51 = vector.shape_cast %50 : vector<1x96x32xf32> to vector<96x32xf32>
    %cst_38 = arith.constant dense<0.000000e+00> : vector<256x32xf32>
    %52 = tpu.matmul %49, %51, %cst_38 {dimension_numbers = #tpu.dot_dimension_numbers<[1], [0], [0], [1], [0, 0, 1, 1], [], []>} : vector<256x96xf32>, vector<96x32xf32>, vector<256x32xf32> -> vector<256x32xf32>
    %53 = arith.addf %47, %52 : vector<256x32xf32>
    %c2 = arith.constant 2 : index
    %c0_39 = arith.constant 0 : index
    %c0_40 = arith.constant 0 : index
    %54 = vector.load %arg9[%c2, %c0_39, %c0_40] : memref<18x16x96xf32, #tpu.memory_space<vmem>>, vector<16x16x96xf32>
    %55 = vector.shape_cast %54 : vector<16x16x96xf32> to vector<256x96xf32>
    %c2_41 = arith.constant 2 : index
    %c0_42 = arith.constant 0 : index
    %c0_43 = arith.constant 0 : index
    %56 = vector.load %arg6[%c2_41, %c0_42, %c0_43] : memref<3x96x32xf32, #tpu.memory_space<vmem>>, vector<1x96x32xf32>
    %57 = vector.shape_cast %56 : vector<1x96x32xf32> to vector<96x32xf32>
    %cst_44 = arith.constant dense<0.000000e+00> : vector<256x32xf32>
    %58 = tpu.matmul %55, %57, %cst_44 {dimension_numbers = #tpu.dot_dimension_numbers<[1], [0], [0], [1], [0, 0, 1, 1], [], []>} : vector<256x96xf32>, vector<96x32xf32>, vector<256x32xf32> -> vector<256x32xf32>
    %59 = arith.addf %53, %58 : vector<256x32xf32>
    %c0_45 = arith.constant 0 : index
    %c0_46 = arith.constant 0 : index
    %60 = vector.load %arg7[%c0_45, %c0_46] : memref<1x32xf32, #tpu.memory_space<vmem>>, vector<1x32xf32>
    %61 = vector.broadcast %60 : vector<1x32xf32> to vector<256x32xf32>
    %62 = arith.addf %59, %61 : vector<256x32xf32>
    %c0_47 = arith.constant 0 : index
    %c0_48 = arith.constant 0 : index
    %c0_49 = arith.constant 0 : index
    %c0_50 = arith.constant 0 : index
    %63 = vector.load %arg8[%c0_47, %c0_48, %c0_49, %c0_50] : memref<1x1x256x32xf32, #tpu.memory_space<vmem>>, vector<1x1x256x32xf32>
    %64 = vector.shape_cast %63 : vector<1x1x256x32xf32> to vector<256x32xf32>
    %65 = vector.shape_cast %62 : vector<256x32xf32> to vector<1x1x256x32xf32>
    tpu.vector_store %arg8[%c0_47, %c0_48, %c0_49, %c0_50], %65 {strides = array<i32>} : memref<1x1x256x32xf32, #tpu.memory_space<vmem>>, vector<1x1x256x32xf32>,
    return
  }
  func.func @transform_0(%arg0: i32, %arg1: i32) -> (i32, i32, i32, i32) {
    %c0_i32 = arith.constant 0 : i32
    %c0_i32_0 = arith.constant 0 : i32
    %c0_i32_1 = arith.constant 0 : i32
    return %arg0, %arg1, %c0_i32, %c0_i32_0 : i32, i32, i32, i32
  }
  func.func @transform_1(%arg0: i32, %arg1: i32) -> (i32, i32, i32, i32) {
    %c0_i32 = arith.constant 0 : i32
    %c0_i32_0 = arith.constant 0 : i32
    %c0_i32_1 = arith.constant 0 : i32
    return %arg0, %arg1, %c0_i32, %c0_i32_0 : i32, i32, i32, i32
  }
  func.func @transform_2(%arg0: i32, %arg1: i32) -> (i32, i32) {
    %c0_i32 = arith.constant 0 : i32
    %c0_i32_0 = arith.constant 0 : i32
    %c0_i32_1 = arith.constant 0 : i32
    return %c0_i32, %c0_i32_0 : i32, i32
  }
  func.func @transform_3(%arg0: i32, %arg1: i32) -> (i32, i32) {
    %c0_i32 = arith.constant 0 : i32
    %c0_i32_0 = arith.constant 0 : i32
    %c0_i32_1 = arith.constant 0 : i32
    return %c0_i32, %c0_i32_0 : i32, i32
  }
  func.func @transform_4(%arg0: i32, %arg1: i32) -> (i32, i32, i32) {
    %c0_i32 = arith.constant 0 : i32
    %c0_i32_0 = arith.constant 0 : i32
    %c0_i32_1 = arith.constant 0 : i32
    %c0_i32_2 = arith.constant 0 : i32
    return %c0_i32, %c0_i32_0, %c0_i32_1 : i32, i32, i32
  }
  func.func @transform_5(%arg0: i32, %arg1: i32) -> (i32, i32) {
    %c0_i32 = arith.constant 0 : i32
    %c0_i32_0 = arith.constant 0 : i32
    %c0_i32_1 = arith.constant 0 : i32
    return %c0_i32, %c0_i32_0 : i32, i32
  }
  func.func @transform_6(%arg0: i32, %arg1: i32) -> (i32, i32, i32, i32) {
    %c0_i32 = arith.constant 0 : i32
    %c0_i32_0 = arith.constant 0 : i32
    %c0_i32_1 = arith.constant 0 : i32
    return %arg0, %arg1, %c0_i32, %c0_i32_0 : i32, i32, i32, i32
  }
}

</mosaic_0001>

<llo_original>
// kernel: tpu_custom_call.1
$region0: #{tpu_custom_call.1}
  #allocation0 [shape = 'u32[]', space=smem, size = 0x4, offset = 0x4, fixed_abs, tag = 'smem constant byte address 0x4 - core index']
  #allocation1 [shape = 'u32[144,128]{1,0:T(1,128)}', space=vmem, size = 0x12000, scoped, tag = 'internal scratch']
  #allocation2 [shape = 'f32[18,16,96]{2,1,0:T(8,128)}', space=vmem, size = 0x24000, scoped, tag = 'scratch operand']
  %s0 = inlined_call_operand.vmem [shape: f32[2,1,256,4], index: 0, kind: input, shape index: {}]
  %s1 = inlined_call_operand.vmem [shape: f32[2,1,32,4], index: 1, kind: input, shape index: {}]
  %s2 = inlined_call_operand.vmem [shape: f32[4,32], index: 2, kind: input, shape index: {}]
  %s3 = inlined_call_operand.vmem [shape: f32[1,32], index: 3, kind: input, shape index: {}]
  %s4 = inlined_call_operand.vmem [shape: f32[3,96,32], index: 4, kind: input, shape index: {}]
  %s5 = inlined_call_operand.vmem [shape: f32[1,32], index: 5, kind: input, shape index: {}]
  %s6 = inlined_call_operand.vmem [shape: f32[2,1,256,32], index: 6, kind: output, shape index: {}]
  %s7 = sld [smem:[#allocation0]]
  $region57: #{tpu_custom_call.1} parent=0
    _
  %s9 = ssub.s32 1, %s7
  %s10 = scalar_select 0, %s9, %s7
  loop: start=0, step=1, limit=4
  $region2: #{tpu_custom_call.1} parent=0 // loop_pre_header
    _
  $region3: #{tpu_custom_call.1} parent=0 // loop_header
    %s12 = sphi 0, %s16
    %p13 = scmp.ge.s32.totalorder %s12, 4
    %s19 = sphi 0, %s31
    %s20 = sphi 0, %s27
    %s21 = sphi 0, %s19
    %s22 = sphi 0, %s20
    %s23 = sphi 0, %s21
    %s24 = sphi 0, %s22
    %s36 = sphi 0, %s38
    %s39 = sphi 0, %s36
    %s40 = sphi 0, %s39
    %s56 = sphi 0, %s40
    %s64 = sphi 0, %s66
    %s67 = sphi 0, %s64
    %s68 = sphi 0, %s67
    %s84 = sphi 0, %s68
    %s88 = sphi 0, %s88
    %s90 = sphi 0, %s88
    %s91 = sphi 0, %s90
    %s105 = sphi 0, %s91
    %s109 = sphi 0, %s109
    %s111 = sphi 0, %s109
    %s112 = sphi 0, %s111
    %s126 = sphi 0, %s112
    %s130 = sphi 0, %s130
    %s132 = sphi 0, %s130
    %s133 = sphi 0, %s132
    %s147 = sphi 0, %s133
    %s151 = sphi 0, %s151
    %s153 = sphi 0, %s151
    %s154 = sphi 0, %s153
    %s168 = sphi 0, %s154
    %s176 = sphi 0, %s178
    %s179 = sphi 0, %s176
    %s180 = sphi 0, %s179
    %s196 = sphi 0, %s180
  $region4: #{tpu_custom_call.1} parent=0 // loop_header_branch
    %15 = sbr.rel (%p13) target = $region8
  $region5: #{tpu_custom_call.1} parent=0 // loop_body
    %s17 = ssub.s32 %s12, 1
    %s18 = ssub.s32 %s12, 2
    %s25 = sadd.s32 1, %s20
    %p26 = scmp.ge.s32.totalorder %s25, 1
    %s27 = scalar_select %p26, 0, %s25
    %s28 = sadd.s32 1, %s19
    %s29 = scalar_select %p26, %s28, %s19
    %p30 = scmp.ge.s32.totalorder %s29, 2
    %s31 = scalar_select %p30, 0, %s29
    %s32 = ssub.s32 %s19, %s31
    %s33 = ssub.s32 %s20, %s27
    %s34 = sor.u32 %s32, %s33
    %p35 = scmp.eq.s32.totalorder %s34, 0
    %s37 = sadd.s32 %s36, 1
    %s38 = scalar_select %p35, %s36, %s37
    %p41 = pneg %p35
    %p42 = scmp.eq.s32.totalorder %s12, 1
    %p43 = por %p41, %p42
    %p44 = scmp.ne.s32.totalorder %s36, %s39
    %p45 = scmp.eq.s32.totalorder %s12, 0
    %p46 = por %p44, %p45
    %p47 = scmp.ne.s32.totalorder %s36, %s39
    %p48 = scmp.eq.s32.totalorder %s17, 1
    %p49 = por %p47, %p48
    %p50 = scmp.ne.s32.totalorder %s39, %s40
    %p51 = scmp.eq.s32.totalorder %s17, 0
    %p52 = por %p50, %p51
    %p53 = scmp.ne.s32.totalorder %s39, %s40
    %p54 = scmp.eq.s32.totalorder %s18, 1
    %p55 = por %p53, %p54
    %p57 = scmp.ne.s32.totalorder %s40, %s56
    %p58 = scmp.eq.s32.totalorder %s18, 0
    %p59 = por %p57, %p58
    %s60 = ssub.s32 %s19, %s31
    %s61 = ssub.s32 %s20, %s27
    %s62 = sor.u32 %s60, %s61
    %p63 = scmp.eq.s32.totalorder %s62, 0
    %s65 = sadd.s32 %s64, 1
    %s66 = scalar_select %p63, %s64, %s65
    %p69 = pneg %p63
    %p70 = scmp.eq.s32.totalorder %s12, 1
    %p71 = por %p69, %p70
    %p72 = scmp.ne.s32.totalorder %s64, %s67
    %p73 = scmp.eq.s32.totalorder %s12, 0
    %p74 = por %p72, %p73
    %p75 = scmp.ne.s32.totalorder %s64, %s67
    %p76 = scmp.eq.s32.totalorder %s17, 1
    %p77 = por %p75, %p76
    %p78 = scmp.ne.s32.totalorder %s67, %s68
    %p79 = scmp.eq.s32.totalorder %s17, 0
    %p80 = por %p78, %p79
    %p81 = scmp.ne.s32.totalorder %s67, %s68
    %p82 = scmp.eq.s32.totalorder %s18, 1
    %p83 = por %p81, %p82
    %p85 = scmp.ne.s32.totalorder %s68, %s84
    %p86 = scmp.eq.s32.totalorder %s18, 0
    %p87 = por %p85, %p86
    %s89 = sadd.s32 %s88, 1
    %p92 = scmp.eq.s32.totalorder %s12, 1
    %p93 = scmp.ne.s32.totalorder %s88, %s90
    %p94 = scmp.eq.s32.totalorder %s12, 0
    %p95 = por %p93, %p94
    %p96 = scmp.ne.s32.totalorder %s88, %s90
    %p97 = scmp.eq.s32.totalorder %s17, 1
    %p98 = por %p96, %p97
    %p99 = scmp.ne.s32.totalorder %s90, %s91
    %p100 = scmp.eq.s32.totalorder %s17, 0
    %p101 = por %p99, %p100
    %p102 = scmp.ne.s32.totalorder %s90, %s91
    %p103 = scmp.eq.s32.totalorder %s18, 1
    %p104 = por %p102, %p103
    %p106 = scmp.ne.s32.totalorder %s91, %s105
    %p107 = scmp.eq.s32.totalorder %s18, 0
    %p108 = por %p106, %p107
    %s110 = sadd.s32 %s109, 1
    %p113 = scmp.eq.s32.totalorder %s12, 1
    %p114 = scmp.ne.s32.totalorder %s109, %s111
    %p115 = scmp.eq.s32.totalorder %s12, 0
    %p116 = por %p114, %p115
    %p117 = scmp.ne.s32.totalorder %s109, %s111
    %p118 = scmp.eq.s32.totalorder %s17, 1
    %p119 = por %p117, %p118
    %p120 = scmp.ne.s32.totalorder %s111, %s112
    %p121 = scmp.eq.s32.totalorder %s17, 0
    %p122 = por %p120, %p121
    %p123 = scmp.ne.s32.totalorder %s111, %s112
    %p124 = scmp.eq.s32.totalorder %s18, 1
    %p125 = por %p123, %p124
    %p127 = scmp.ne.s32.totalorder %s112, %s126
    %p128 = scmp.eq.s32.totalorder %s18, 0
    %p129 = por %p127, %p128
    %s131 = sadd.s32 %s130, 1
    %p134 = scmp.eq.s32.totalorder %s12, 1
    %p135 = scmp.ne.s32.totalorder %s130, %s132
    %p136 = scmp.eq.s32.totalorder %s12, 0
    %p137 = por %p135, %p136
    %p138 = scmp.ne.s32.totalorder %s130, %s132
    %p139 = scmp.eq.s32.totalorder %s17, 1
    %p140 = por %p138, %p139
    %p141 = scmp.ne.s32.totalorder %s132, %s133
    %p142 = scmp.eq.s32.totalorder %s17, 0
    %p143 = por %p141, %p142
    %p144 = scmp.ne.s32.totalorder %s132, %s133
    %p145 = scmp.eq.s32.totalorder %s18, 1
    %p146 = por %p144, %p145
    %p148 = scmp.ne.s32.totalorder %s133, %s147
    %p149 = scmp.eq.s32.totalorder %s18, 0
    %p150 = por %p148, %p149
    %s152 = sadd.s32 %s151, 1
    %p155 = scmp.eq.s32.totalorder %s12, 1
    %p156 = scmp.ne.s32.totalorder %s151, %s153
    %p157 = scmp.eq.s32.totalorder %s12, 0
    %p158 = por %p156, %p157
    %p159 = scmp.ne.s32.totalorder %s151, %s153
    %p160 = scmp.eq.s32.totalorder %s17, 1
    %p161 = por %p159, %p160
    %p162 = scmp.ne.s32.totalorder %s153, %s154
    %p163 = scmp.eq.s32.totalorder %s17, 0
    %p164 = por %p162, %p163
    %p165 = scmp.ne.s32.totalorder %s153, %s154
    %p166 = scmp.eq.s32.totalorder %s18, 1
    %p167 = por %p165, %p166
    %p169 = scmp.ne.s32.totalorder %s154, %s168
    %p170 = scmp.eq.s32.totalorder %s18, 0
    %p171 = por %p169, %p170
    %s172 = ssub.s32 %s19, %s31
    %s173 = ssub.s32 %s20, %s27
    %s174 = sor.u32 %s172, %s173
    %p175 = scmp.eq.s32.totalorder %s174, 0
    %s177 = sadd.s32 %s176, 1
    %s178 = scalar_select %p175, %s176, %s177
    %p181 = pneg %p175
    %p182 = scmp.eq.s32.totalorder %s12, 1
    %p183 = por %p181, %p182
    %p184 = scmp.ne.s32.totalorder %s176, %s179
    %p185 = scmp.eq.s32.totalorder %s12, 0
    %p186 = por %p184, %p185
    %p187 = scmp.ne.s32.totalorder %s176, %s179
    %p188 = scmp.eq.s32.totalorder %s17, 1
    %p189 = por %p187, %p188
    %p190 = scmp.ne.s32.totalorder %s179, %s180
    %p191 = scmp.eq.s32.totalorder %s17, 0
    %p192 = por %p190, %p191
    %p193 = scmp.ne.s32.totalorder %s179, %s180
    %p194 = scmp.eq.s32.totalorder %s18, 1
    %p195 = por %p193, %p194
    %p197 = scmp.ne.s32.totalorder %s180, %s196
    %p198 = scmp.eq.s32.totalorder %s18, 0
    %p199 = por %p197, %p198
    %p200 = scmp.le.s32.totalorder 1, %s12
    %p201 = scmp.lt.s32.totalorder %s12, 3
    %p202 = pnand %p200, %p201
    %p203 = pneg %p202
    // Predicated region
    $region9: #{tpu_custom_call.1} parent=5 // pred_check
      _
    $region10: #{tpu_custom_call.1} parent=5 // pred_check_branch
      %205 = sbr.rel (%p202) target = $region12
    $region11: #{tpu_custom_call.1} parent=5 // pred_region
      %s206 = ssub.s32 %s12, 1
      // Predicated region
      $region13: #{tpu_custom_call.1} parent=11 // pred_check
        %p207 = pneg %p101
      $region14: #{tpu_custom_call.1} parent=11 // pred_check_branch
        %209 = sbr.rel (%p207) target = $region16
      $region15: #{tpu_custom_call.1} parent=11 // pred_region
        _
      $region16: #{tpu_custom_call.1} parent=11 // pred_fallthru
        _
      // Predicated region
      $region17: #{tpu_custom_call.1} parent=11 // pred_check
        %p210 = pneg %p122
      $region18: #{tpu_custom_call.1} parent=11 // pred_check_branch
        %212 = sbr.rel (%p210) target = $region20
      $region19: #{tpu_custom_call.1} parent=11 // pred_region
        _
      $region20: #{tpu_custom_call.1} parent=11 // pred_fallthru
        _
      // Predicated region
      $region21: #{tpu_custom_call.1} parent=11 // pred_check
        %p213 = pneg %p143
      $region22: #{tpu_custom_call.1} parent=11 // pred_check_branch
        %215 = sbr.rel (%p213) target = $region24
      $region23: #{tpu_custom_call.1} parent=11 // pred_region
        _
      $region24: #{tpu_custom_call.1} parent=11 // pred_fallthru
        _
      // Predicated region
      $region25: #{tpu_custom_call.1} parent=11 // pred_check
        %p216 = pneg %p164
      $region26: #{tpu_custom_call.1} parent=11 // pred_check_branch
        %218 = sbr.rel (%p216) target = $region28
      $region27: #{tpu_custom_call.1} parent=11 // pred_region
        _
      $region28: #{tpu_custom_call.1} parent=11 // pred_fallthru
        _
    $region12: #{tpu_custom_call.1} parent=5 // pred_fallthru
      _
    %p219 = scmp.lt.s32.totalorder %s12, 2
    // Predicated region
    $region29: #{tpu_custom_call.1} parent=5 // pred_check
      %p220 = pneg %p219
    $region30: #{tpu_custom_call.1} parent=5 // pred_check_branch
      %222 = sbr.rel (%p220) target = $region32
    $region31: #{tpu_custom_call.1} parent=5 // pred_region
      // Predicated region
      $region33: #{tpu_custom_call.1} parent=31 // pred_check
        %p223 = pneg %p46
      $region34: #{tpu_custom_call.1} parent=31 // pred_check_branch
        %225 = sbr.rel (%p223) target = $region36
      $region35: #{tpu_custom_call.1} parent=31 // pred_region
        %p226 = scmp.lt.s32.totalorder %s19, 1
        %s227 = scalar_select %p226, %s19, 1
        %p228 = scmp.lt.s32.totalorder %s20, 0
        %s229 = scalar_select %p228, %s20, 0
        %s230 = smul.addr %s229, 32
        %s231 = smul.addr %s227, 32
        %s232 = sadd.s32 %s230, %s231
        %s233 = smul.addr %s232, 8
        %s234 = scalar_lea.vmem %s0, %s233
      $region36: #{tpu_custom_call.1} parent=31 // pred_fallthru
        _
      // Predicated region
      $region37: #{tpu_custom_call.1} parent=31 // pred_check
        %p235 = pneg %p74
      $region38: #{tpu_custom_call.1} parent=31 // pred_check_branch
        %237 = sbr.rel (%p235) target = $region40
      $region39: #{tpu_custom_call.1} parent=31 // pred_region
        %p238 = scmp.lt.s32.totalorder %s19, 1
        %s239 = scalar_select %p238, %s19, 1
        %p240 = scmp.lt.s32.totalorder %s20, 0
        %s241 = scalar_select %p240, %s20, 0
        %s242 = smul.addr %s241, 4
        %s243 = smul.addr %s239, 4
        %s244 = sadd.s32 %s242, %s243
        %s245 = smul.addr %s244, 8
        %s246 = scalar_lea.vmem %s1, %s245
      $region40: #{tpu_custom_call.1} parent=31 // pred_fallthru
        _
    $region32: #{tpu_custom_call.1} parent=5 // pred_fallthru
      _
    %p247 = scmp.le.s32.totalorder 1, %s12
    %p248 = scmp.lt.s32.totalorder %s12, 3
    %p249 = pnand %p247, %p248
    %p250 = pneg %p249
    // Predicated region
    $region41: #{tpu_custom_call.1} parent=5 // pred_check
      _
    $region42: #{tpu_custom_call.1} parent=5 // pred_check_branch
      %252 = sbr.rel (%p249) target = $region44
    $region43: #{tpu_custom_call.1} parent=5 // pred_region
      %s253 = ssub.s32 %s12, 1
      %p254 = scmp.lt.s32.totalorder %s21, 1
      %s255 = scalar_select %p254, %s21, 1
      %p256 = scmp.lt.s32.totalorder %s22, 0
      %s257 = scalar_select %p256, %s22, 0
      %s258 = smul.addr %s257, 32
      %s259 = smul.addr %s255, 32
      %s260 = sadd.s32 %s258, %s259
      %s261 = smul.addr %s260, 8
      %s262 = scalar_lea.vmem %s0, %s261
      %p263 = pneg %p52
      %p264 = pneg %p49
      %p265 = scmp.lt.s32.totalorder %s21, 1
      %s266 = scalar_select %p265, %s21, 1
      %p267 = scmp.lt.s32.totalorder %s22, 0
      %s268 = scalar_select %p267, %s22, 0
      %s269 = smul.addr %s268, 4
      %s270 = smul.addr %s266, 4
      %s271 = sadd.s32 %s269, %s270
      %s272 = smul.addr %s271, 8
      %s273 = scalar_lea.vmem %s1, %s272
      %p274 = pneg %p80
      %p275 = pneg %p77
      %p276 = pneg %p101
      %p277 = pneg %p98
      %p278 = pneg %p122
      %p279 = pneg %p119
      %p280 = pneg %p143
      %p281 = pneg %p140
      %p282 = pneg %p164
      %p283 = pneg %p161
      %p284 = pneg %p192
      %p285 = pneg %p189
      %p286 = scmp.lt.s32.totalorder %s21, 1
      %s287 = scalar_select %p286, %s21, 1
      %p288 = scmp.lt.s32.totalorder %s22, 0
      %s289 = scalar_select %p288, %s22, 0
      %s290 = smul.addr %s289, 32
      %s291 = smul.addr %s287, 32
      %s292 = sadd.s32 %s290, %s291
      %s293 = smul.addr %s292, 8
      %s294 = scalar_lea.vmem %s6, %s293
      %p295 = scmp.lt.s32.totalorder %s21, 1
      %s296 = scalar_select %p295, %s21, 1
      %p297 = scmp.lt.s32.totalorder %s22, 0
      %s298 = scalar_select %p297, %s22, 0
      %s299 = smul.addr %s298, 32
      %s300 = smul.addr %s296, 32
      %s301 = sadd.s32 %s299, %s300
      %s302 = smul.addr %s301, 8
      %s303 = scalar_lea.vmem %s0, %s302
      %p304 = scmp.lt.s32.totalorder %s21, 1
      %s305 = scalar_select %p304, %s21, 1
      %p306 = scmp.lt.s32.totalorder %s22, 0
      %s307 = scalar_select %p306, %s22, 0
      %s308 = smul.addr %s307, 4
      %s309 = smul.addr %s305, 4
      %s310 = sadd.s32 %s308, %s309
      %s311 = smul.addr %s310, 8
      %s312 = scalar_lea.vmem %s1, %s311
      %p313 = scmp.lt.s32.totalorder %s21, 1
      %s314 = scalar_select %p313, %s21, 1
      %p315 = scmp.lt.s32.totalorder %s22, 0
      %s316 = scalar_select %p315, %s22, 0
      %s317 = smul.addr %s316, 32
      %s318 = smul.addr %s314, 32
      %s319 = sadd.s32 %s317, %s318
      %s320 = smul.addr %s319, 8
      %s321 = scalar_lea.vmem %s6, %s320
      %v322 = vld [vmem:[%s2] sm:$0xf]
      %v323 = vld [vmem:[%s3] sm:$0x1]
      %v324 = vld [vmem:[%s303] sm:$0xff]
      %v325 = vld [vmem:[%s303 + $0x8] sm:$0xff]
      %v326 = vld [vmem:[%s303 + $0x10] sm:$0xff]
      %v327 = vld [vmem:[%s303 + $0x18] sm:$0xff]
      %v328 = vld [vmem:[%s303 + $0x20] sm:$0xff]
      %v329 = vld [vmem:[%s303 + $0x28] sm:$0xff]
      %v330 = vld [vmem:[%s303 + $0x30] sm:$0xff]
      %v331 = vld [vmem:[%s303 + $0x38] sm:$0xff]
      %v332 = vld [vmem:[%s303 + $0x40] sm:$0xff]
      %v333 = vld [vmem:[%s303 + $0x48] sm:$0xff]
      %v334 = vld [vmem:[%s303 + $0x50] sm:$0xff]
      %v335 = vld [vmem:[%s303 + $0x58] sm:$0xff]
      %v336 = vld [vmem:[%s303 + $0x60] sm:$0xff]
      %v337 = vld [vmem:[%s303 + $0x68] sm:$0xff]
      %v338 = vld [vmem:[%s303 + $0x70] sm:$0xff]
      %v339 = vld [vmem:[%s303 + $0x78] sm:$0xff]
      %v340 = vld [vmem:[%s303 + $0x80] sm:$0xff]
      %v341 = vld [vmem:[%s303 + $0x88] sm:$0xff]
      %v342 = vld [vmem:[%s303 + $0x90] sm:$0xff]
      %v343 = vld [vmem:[%s303 + $0x98] sm:$0xff]
      %v344 = vld [vmem:[%s303 + $0xa0] sm:$0xff]
      %v345 = vld [vmem:[%s303 + $0xa8] sm:$0xff]
      %v346 = vld [vmem:[%s303 + $0xb0] sm:$0xff]
      %v347 = vld [vmem:[%s303 + $0xb8] sm:$0xff]
      %v348 = vld [vmem:[%s303 + $0xc0] sm:$0xff]
      %v349 = vld [vmem:[%s303 + $0xc8] sm:$0xff]
      %v350 = vld [vmem:[%s303 + $0xd0] sm:$0xff]
      %v351 = vld [vmem:[%s303 + $0xd8] sm:$0xff]
      %v352 = vld [vmem:[%s303 + $0xe0] sm:$0xff]
      %v353 = vld [vmem:[%s303 + $0xe8] sm:$0xff]
      %v354 = vld [vmem:[%s303 + $0xf0] sm:$0xff]
      %v355 = vld [vmem:[%s303 + $0xf8] sm:$0xff]
      %v357 = vlaneseq
      %v358 = vshrl.u32 %v357, 7
      %v359 = vsub.s32 0, %v358
      %v360 = vrot.slane %v323, %v359
      %vm362 = vcmask 31744
      %v364 = vsel %vm362, %v324, 0
      %v367 = vsel %vm362, %v325, 0
      %v370 = vsel %vm362, %v326, 0
      %v373 = vsel %vm362, %v327, 0
      %v376 = vsel %vm362, %v328, 0
      %v379 = vsel %vm362, %v329, 0
      %v382 = vsel %vm362, %v330, 0
      %v385 = vsel %vm362, %v331, 0
      %v388 = vsel %vm362, %v332, 0
      %v391 = vsel %vm362, %v333, 0
      %v394 = vsel %vm362, %v334, 0
      %v397 = vsel %vm362, %v335, 0
      %v400 = vsel %vm362, %v336, 0
      %v403 = vsel %vm362, %v337, 0
      %v406 = vsel %vm362, %v338, 0
      %v409 = vsel %vm362, %v339, 0
      %v412 = vsel %vm362, %v340, 0
      %v415 = vsel %vm362, %v341, 0
      %v418 = vsel %vm362, %v342, 0
      %v421 = vsel %vm362, %v343, 0
      %v424 = vsel %vm362, %v344, 0
      %v427 = vsel %vm362, %v345, 0
      %v430 = vsel %vm362, %v346, 0
      %v433 = vsel %vm362, %v347, 0
      %v436 = vsel %vm362, %v348, 0
      %v439 = vsel %vm362, %v349, 0
      %v442 = vsel %vm362, %v350, 0
      %v445 = vsel %vm362, %v351, 0
      %v448 = vsel %vm362, %v352, 0
      %v451 = vsel %vm362, %v353, 0
      %v454 = vsel %vm362, %v354, 0
      %v457 = vsel %vm362, %v355, 0
      %vm459 = vcmask 1043456
      %v461 = vsel %vm459, %v322, 0
      %463 = vmatprep.subr.mxu0 0.0
      %464 = vmatpush1.msra.mxu0 0.0
      %465 = vmatprep.subr.mxu0 0.0
      %466 = vmatpush1.msra.mxu0 0.0
      %467 = vmatprep.subr.mxu0 0.0
      %468 = vmatpush1.msra.mxu0 0.0
      %469 = vmatprep.subr.mxu0 0.0
      %470 = vmatpush1.msra.mxu0 0.0
      %471 = vmatprep.subr.mxu0 0.0
      %472 = vmatpush1.msra.mxu0 0.0
      %473 = vmatprep.subr.mxu0 0.0
      %474 = vmatpush1.msra.mxu0 0.0
      %475 = vmatprep.subr.mxu0 0.0
      %476 = vmatpush1.msra.mxu0 0.0
      %477 = vmatprep.subr.mxu0 0.0
      %478 = vmatpush1.msra.mxu0 0.0
      %479 = vmatprep.subr.mxu0 0.0
      %480 = vmatpush1.msra.mxu0 0.0
      %481 = vmatprep.subr.mxu0 0.0
      %482 = vmatpush1.msra.mxu0 0.0
      %483 = vmatprep.subr.mxu0 0.0
      %484 = vmatpush1.msra.mxu0 0.0
      %485 = vmatprep.subr.mxu0 0.0
      %486 = vmatpush1.msra.mxu0 0.0
      %487 = vmatprep.subr.mxu0 0.0
      %488 = vmatpush1.msra.mxu0 0.0
      %489 = vmatprep.subr.mxu0 0.0
      %490 = vmatpush1.msra.mxu0 0.0
      %491 = vmatprep.subr.mxu0 0.0
      %492 = vmatpush1.msra.mxu0 0.0
      %493 = vmatprep.subr.mxu0 0.0
      %494 = vmatpush1.msra.mxu0 %v461
      %495 = vmatprep.subr.mxu0 0.0
      %496 = vmatpush2.msra.mxu0 0.0
      %497 = vmatprep.subr.mxu0 0.0
      %498 = vmatpush2.msra.mxu0 0.0
      %499 = vmatprep.subr.mxu0 0.0
      %500 = vmatpush2.msra.mxu0 0.0
      %501 = vmatprep.subr.mxu0 0.0
      %502 = vmatpush2.msra.mxu0 0.0
      %503 = vmatprep.subr.mxu0 0.0
      %504 = vmatpush2.msra.mxu0 0.0
      %505 = vmatprep.subr.mxu0 0.0
      %506 = vmatpush2.msra.mxu0 0.0
      %507 = vmatprep.subr.mxu0 0.0
      %508 = vmatpush2.msra.mxu0 0.0
      %509 = vmatprep.subr.mxu0 0.0
      %510 = vmatpush2.msra.mxu0 0.0
      %511 = vmatprep.subr.mxu0 0.0
      %512 = vmatpush2.msra.mxu0 0.0
      %513 = vmatprep.subr.mxu0 0.0
      %514 = vmatpush2.msra.mxu0 0.0
      %515 = vmatprep.subr.mxu0 0.0
      %516 = vmatpush2.msra.mxu0 0.0
      %517 = vmatprep.subr.mxu0 0.0
      %518 = vmatpush2.msra.mxu0 0.0
      %519 = vmatprep.subr.mxu0 0.0
      %520 = vmatpush2.msra.mxu0 0.0
      %521 = vmatprep.subr.mxu0 0.0
      %522 = vmatpush2.msra.mxu0 0.0
      %523 = vmatprep.subr.mxu0 0.0
      %524 = vmatpush2.msra.mxu0 0.0
      %525 = vmatprep.subr.mxu0 0.0
      %526 = vmatpush2.msra.mxu0 0.0
      %527 = vmatprep.mubr.f32.mxu0 0.0
      %528 = vmatmul.mubr.f32.gmra.mxu0 %v364
      %v529 = vpop.f32.mrf.mxu0
      %v530 = vadd.f32 %v360, %v529
      %v531 = vpop.f32.mrf.mxu0
      %532 = vmatprep.mubr.f32.mxu0 0.0
      %533 = vmatmul.mubr.f32.gmra.mxu0 %v367
      %v534 = vpop.f32.mrf.mxu0
      %v535 = vadd.f32 %v360, %v534
      %v536 = vpop.f32.mrf.mxu0
      %537 = vmatprep.mubr.f32.mxu0 0.0
      %538 = vmatmul.mubr.f32.gmra.mxu0 %v370
      %v539 = vpop.f32.mrf.mxu0
      %v540 = vadd.f32 %v360, %v539
      %v541 = vpop.f32.mrf.mxu0
      %542 = vmatprep.mubr.f32.mxu0 0.0
      %543 = vmatmul.mubr.f32.gmra.mxu0 %v373
      %v544 = vpop.f32.mrf.mxu0
      %v545 = vadd.f32 %v360, %v544
      %v546 = vpop.f32.mrf.mxu0
      %547 = vmatprep.mubr.f32.mxu0 0.0
      %548 = vmatmul.mubr.f32.gmra.mxu0 %v376
      %v549 = vpop.f32.mrf.mxu0
      %v550 = vadd.f32 %v360, %v549
      %v551 = vpop.f32.mrf.mxu0
      %552 = vmatprep.mubr.f32.mxu0 0.0
      %553 = vmatmul.mubr.f32.gmra.mxu0 %v379
      %v554 = vpop.f32.mrf.mxu0
      %v555 = vadd.f32 %v360, %v554
      %v556 = vpop.f32.mrf.mxu0
      %557 = vmatprep.mubr.f32.mxu0 0.0
      %558 = vmatmul.mubr.f32.gmra.mxu0 %v382
      %v559 = vpop.f32.mrf.mxu0
      %v560 = vadd.f32 %v360, %v559
      %v561 = vpop.f32.mrf.mxu0
      %562 = vmatprep.mubr.f32.mxu0 0.0
      %563 = vmatmul.mubr.f32.gmra.mxu0 %v385
      %v564 = vpop.f32.mrf.mxu0
      %v565 = vadd.f32 %v360, %v564
      %v566 = vpop.f32.mrf.mxu0
      %567 = vmatprep.mubr.f32.mxu0 0.0
      %568 = vmatmul.mubr.f32.gmra.mxu0 %v388
      %v569 = vpop.f32.mrf.mxu0
      %v570 = vadd.f32 %v360, %v569
      %v571 = vpop.f32.mrf.mxu0
      %572 = vmatprep.mubr.f32.mxu0 0.0
      %573 = vmatmul.mubr.f32.gmra.mxu0 %v391
      %v574 = vpop.f32.mrf.mxu0
      %v575 = vadd.f32 %v360, %v574
      %v576 = vpop.f32.mrf.mxu0
      %577 = vmatprep.mubr.f32.mxu0 0.0
      %578 = vmatmul.mubr.f32.gmra.mxu0 %v394
      %v579 = vpop.f32.mrf.mxu0
      %v580 = vadd.f32 %v360, %v579
      %v581 = vpop.f32.mrf.mxu0
      %582 = vmatprep.mubr.f32.mxu0 0.0
      %583 = vmatmul.mubr.f32.gmra.mxu0 %v397
      %v584 = vpop.f32.mrf.mxu0
      %v585 = vadd.f32 %v360, %v584
      %v586 = vpop.f32.mrf.mxu0
      %587 = vmatprep.mubr.f32.mxu0 0.0
      %588 = vmatmul.mubr.f32.gmra.mxu0 %v400
      %v589 = vpop.f32.mrf.mxu0
      %v590 = vadd.f32 %v360, %v589
      %v591 = vpop.f32.mrf.mxu0
      %592 = vmatprep.mubr.f32.mxu0 0.0
      %593 = vmatmul.mubr.f32.gmra.mxu0 %v403
      %v594 = vpop.f32.mrf.mxu0
      %v595 = vadd.f32 %v360, %v594
      %v596 = vpop.f32.mrf.mxu0
      %597 = vmatprep.mubr.f32.mxu0 0.0
      %598 = vmatmul.mubr.f32.gmra.mxu0 %v406
      %v599 = vpop.f32.mrf.mxu0
      %v600 = vadd.f32 %v360, %v599
      %v601 = vpop.f32.mrf.mxu0
      %602 = vmatprep.mubr.f32.mxu0 0.0
      %603 = vmatmul.mubr.f32.gmra.mxu0 %v409
      %v604 = vpop.f32.mrf.mxu0
      %v605 = vadd.f32 %v360, %v604
      %v606 = vpop.f32.mrf.mxu0
      %607 = vmatprep.mubr.f32.mxu0 0.0
      %608 = vmatmul.mubr.f32.gmra.mxu0 %v412
      %v609 = vpop.f32.mrf.mxu0
      %v610 = vadd.f32 %v360, %v609
      %v611 = vpop.f32.mrf.mxu0
      %612 = vmatprep.mubr.f32.mxu0 0.0
      %613 = vmatmul.mubr.f32.gmra.mxu0 %v415
      %v614 = vpop.f32.mrf.mxu0
      %v615 = vadd.f32 %v360, %v614
      %v616 = vpop.f32.mrf.mxu0
      %617 = vmatprep.mubr.f32.mxu0 0.0
      %618 = vmatmul.mubr.f32.gmra.mxu0 %v418
      %v619 = vpop.f32.mrf.mxu0
      %v620 = vadd.f32 %v360, %v619
      %v621 = vpop.f32.mrf.mxu0
      %622 = vmatprep.mubr.f32.mxu0 0.0
      %623 = vmatmul.mubr.f32.gmra.mxu0 %v421
      %v624 = vpop.f32.mrf.mxu0
      %v625 = vadd.f32 %v360, %v624
      %v626 = vpop.f32.mrf.mxu0
      %627 = vmatprep.mubr.f32.mxu0 0.0
      %628 = vmatmul.mubr.f32.gmra.mxu0 %v424
      %v629 = vpop.f32.mrf.mxu0
      %v630 = vadd.f32 %v360, %v629
      %v631 = vpop.f32.mrf.mxu0
      %632 = vmatprep.mubr.f32.mxu0 0.0
      %633 = vmatmul.mubr.f32.gmra.mxu0 %v427
      %v634 = vpop.f32.mrf.mxu0
      %v635 = vadd.f32 %v360, %v634
      %v636 = vpop.f32.mrf.mxu0
      %637 = vmatprep.mubr.f32.mxu0 0.0
      %638 = vmatmul.mubr.f32.gmra.mxu0 %v430
      %v639 = vpop.f32.mrf.mxu0
      %v640 = vadd.f32 %v360, %v639
      %v641 = vpop.f32.mrf.mxu0
      %642 = vmatprep.mubr.f32.mxu0 0.0
      %643 = vmatmul.mubr.f32.gmra.mxu0 %v433
      %v644 = vpop.f32.mrf.mxu0
      %v645 = vadd.f32 %v360, %v644
      %v646 = vpop.f32.mrf.mxu0
      %647 = vmatprep.mubr.f32.mxu0 0.0
      %648 = vmatmul.mubr.f32.gmra.mxu0 %v436
      %v649 = vpop.f32.mrf.mxu0
      %v650 = vadd.f32 %v360, %v649
      %v651 = vpop.f32.mrf.mxu0
      %652 = vmatprep.mubr.f32.mxu0 0.0
      %653 = vmatmul.mubr.f32.gmra.mxu0 %v439
      %v654 = vpop.f32.mrf.mxu0
      %v655 = vadd.f32 %v360, %v654
      %v656 = vpop.f32.mrf.mxu0
      %657 = vmatprep.mubr.f32.mxu0 0.0
      %658 = vmatmul.mubr.f32.gmra.mxu0 %v442
      %v659 = vpop.f32.mrf.mxu0
      %v660 = vadd.f32 %v360, %v659
      %v661 = vpop.f32.mrf.mxu0
      %662 = vmatprep.mubr.f32.mxu0 0.0
      %663 = vmatmul.mubr.f32.gmra.mxu0 %v445
      %v664 = vpop.f32.mrf.mxu0
      %v665 = vadd.f32 %v360, %v664
      %v666 = vpop.f32.mrf.mxu0
      %667 = vmatprep.mubr.f32.mxu0 0.0
      %668 = vmatmul.mubr.f32.gmra.mxu0 %v448
      %v669 = vpop.f32.mrf.mxu0
      %v670 = vadd.f32 %v360, %v669
      %v671 = vpop.f32.mrf.mxu0
      %672 = vmatprep.mubr.f32.mxu0 0.0
      %673 = vmatmul.mubr.f32.gmra.mxu0 %v451
      %v674 = vpop.f32.mrf.mxu0
      %v675 = vadd.f32 %v360, %v674
      %v676 = vpop.f32.mrf.mxu0
      %677 = vmatprep.mubr.f32.mxu0 0.0
      %678 = vmatmul.mubr.f32.gmra.mxu0 %v454
      %v679 = vpop.f32.mrf.mxu0
      %v680 = vadd.f32 %v360, %v679
      %v681 = vpop.f32.mrf.mxu0
      %682 = vmatprep.mubr.f32.mxu0 0.0
      %683 = vmatmul.mubr.f32.gmra.mxu0 %v457
      %v684 = vpop.f32.mrf.mxu0
      %v685 = vadd.f32 %v360, %v684
      %v686 = vpop.f32.mrf.mxu0
      %687 = vdwg.mxu0
      %vm720 = vcmask 1040384
      %v721 = vrot.slane %v530, 7
      %v722 = vrot.slane %v535, 7
      %v723 = vsel %vm720, %v721, %v722
      %v724 = vrot.slane %v540, 7
      %v725 = vrot.slane %v545, 7
      %v726 = vsel %vm720, %v724, %v725
      %v727 = vrot.slane %v550, 7
      %v728 = vrot.slane %v555, 7
      %v729 = vsel %vm720, %v727, %v728
      %v730 = vrot.slane %v560, 7
      %v731 = vrot.slane %v565, 7
      %v732 = vsel %vm720, %v730, %v731
      %v733 = vrot.slane %v570, 7
      %v734 = vrot.slane %v575, 7
      %v735 = vsel %vm720, %v733, %v734
      %v736 = vrot.slane %v580, 7
      %v737 = vrot.slane %v585, 7
      %v738 = vsel %vm720, %v736, %v737
      %v739 = vrot.slane %v590, 7
      %v740 = vrot.slane %v595, 7
      %v741 = vsel %vm720, %v739, %v740
      %v742 = vrot.slane %v600, 7
      %v743 = vrot.slane %v605, 7
      %v744 = vsel %vm720, %v742, %v743
      %v745 = vrot.slane %v610, 7
      %v746 = vrot.slane %v615, 7
      %v747 = vsel %vm720, %v745, %v746
      %v748 = vrot.slane %v620, 7
      %v749 = vrot.slane %v625, 7
      %v750 = vsel %vm720, %v748, %v749
      %v751 = vrot.slane %v630, 7
      %v752 = vrot.slane %v635, 7
      %v753 = vsel %vm720, %v751, %v752
      %v754 = vrot.slane %v640, 7
      %v755 = vrot.slane %v645, 7
      %v756 = vsel %vm720, %v754, %v755
      %v757 = vrot.slane %v650, 7
      %v758 = vrot.slane %v655, 7
      %v759 = vsel %vm720, %v757, %v758
      %v760 = vrot.slane %v660, 7
      %v761 = vrot.slane %v665, 7
      %v762 = vsel %vm720, %v760, %v761
      %v763 = vrot.slane %v670, 7
      %v764 = vrot.slane %v675, 7
      %v765 = vsel %vm720, %v763, %v764
      %v766 = vrot.slane %v680, 7
      %v767 = vrot.slane %v685, 7
      %v768 = vsel %vm720, %v766, %v767
      %v801 = vsel %vm720, 0.0, %v721
      %v802 = vsel %vm720, 0.0, %v724
      %v803 = vsel %vm720, 0.0, %v727
      %v804 = vsel %vm720, 0.0, %v730
      %v805 = vsel %vm720, 0.0, %v733
      %v806 = vsel %vm720, 0.0, %v736
      %v807 = vsel %vm720, 0.0, %v739
      %v808 = vsel %vm720, 0.0, %v742
      %v809 = vsel %vm720, 0.0, %v745
      %v810 = vsel %vm720, 0.0, %v748
      %v811 = vsel %vm720, 0.0, %v751
      %v812 = vsel %vm720, 0.0, %v754
      %v813 = vsel %vm720, 0.0, %v757
      %v814 = vsel %vm720, 0.0, %v760
      %v815 = vsel %vm720, 0.0, %v763
      %v816 = vsel %vm720, 0.0, %v766
      %vm817 = vcmask 1046528
      %v818 = vrot.slane %v530, 1
      %v819 = vrot.slane %v535, 1
      %v820 = vsel %vm817, %v818, %v819
      %v821 = vrot.slane %v540, 1
      %v822 = vrot.slane %v545, 1
      %v823 = vsel %vm817, %v821, %v822
      %v824 = vrot.slane %v550, 1
      %v825 = vrot.slane %v555, 1
      %v826 = vsel %vm817, %v824, %v825
      %v827 = vrot.slane %v560, 1
      %v828 = vrot.slane %v565, 1
      %v829 = vsel %vm817, %v827, %v828
      %v830 = vrot.slane %v570, 1
      %v831 = vrot.slane %v575, 1
      %v832 = vsel %vm817, %v830, %v831
      %v833 = vrot.slane %v580, 1
      %v834 = vrot.slane %v585, 1
      %v835 = vsel %vm817, %v833, %v834
      %v836 = vrot.slane %v590, 1
      %v837 = vrot.slane %v595, 1
      %v838 = vsel %vm817, %v836, %v837
      %v839 = vrot.slane %v600, 1
      %v840 = vrot.slane %v605, 1
      %v841 = vsel %vm817, %v839, %v840
      %v842 = vrot.slane %v610, 1
      %v843 = vrot.slane %v615, 1
      %v844 = vsel %vm817, %v842, %v843
      %v845 = vrot.slane %v620, 1
      %v846 = vrot.slane %v625, 1
      %v847 = vsel %vm817, %v845, %v846
      %v848 = vrot.slane %v630, 1
      %v849 = vrot.slane %v635, 1
      %v850 = vsel %vm817, %v848, %v849
      %v851 = vrot.slane %v640, 1
      %v852 = vrot.slane %v645, 1
      %v853 = vsel %vm817, %v851, %v852
      %v854 = vrot.slane %v650, 1
      %v855 = vrot.slane %v655, 1
      %v856 = vsel %vm817, %v854, %v855
      %v857 = vrot.slane %v660, 1
      %v858 = vrot.slane %v665, 1
      %v859 = vsel %vm817, %v857, %v858
      %v860 = vrot.slane %v670, 1
      %v861 = vrot.slane %v675, 1
      %v862 = vsel %vm817, %v860, %v861
      %v863 = vrot.slane %v680, 1
      %v864 = vrot.slane %v685, 1
      %v865 = vsel %vm817, %v863, %v864
      %v882 = vsel %vm817, %v819, 0.0
      %v883 = vsel %vm817, %v822, 0.0
      %v884 = vsel %vm817, %v825, 0.0
      %v885 = vsel %vm817, %v828, 0.0
      %v886 = vsel %vm817, %v831, 0.0
      %v887 = vsel %vm817, %v834, 0.0
      %v888 = vsel %vm817, %v837, 0.0
      %v889 = vsel %vm817, %v840, 0.0
      %v890 = vsel %vm817, %v843, 0.0
      %v891 = vsel %vm817, %v846, 0.0
      %v892 = vsel %vm817, %v849, 0.0
      %v893 = vsel %vm817, %v852, 0.0
      %v894 = vsel %vm817, %v855, 0.0
      %v895 = vsel %vm817, %v858, 0.0
      %v896 = vsel %vm817, %v861, 0.0
      %v897 = vsel %vm817, %v864, 0.0
      %898 = vrot.lane.b32.xlu0 %v530, 32
      %v899 = vpop.permute.xlu0 %898
      %900 = vrot.lane.b32.xlu0 %v535, 32
      %v901 = vpop.permute.xlu0 %900
      %902 = vrot.lane.b32.xlu0 %v540, 32
      %v903 = vpop.permute.xlu0 %902
      %904 = vrot.lane.b32.xlu0 %v545, 32
      %v905 = vpop.permute.xlu0 %904
      %906 = vrot.lane.b32.xlu0 %v550, 32
      %v907 = vpop.permute.xlu0 %906
      %908 = vrot.lane.b32.xlu0 %v555, 32
      %v909 = vpop.permute.xlu0 %908
      %910 = vrot.lane.b32.xlu0 %v560, 32
      %v911 = vpop.permute.xlu0 %910
      %912 = vrot.lane.b32.xlu0 %v565, 32
      %v913 = vpop.permute.xlu0 %912
      %914 = vrot.lane.b32.xlu0 %v570, 32
      %v915 = vpop.permute.xlu0 %914
      %916 = vrot.lane.b32.xlu0 %v575, 32
      %v917 = vpop.permute.xlu0 %916
      %918 = vrot.lane.b32.xlu0 %v580, 32
      %v919 = vpop.permute.xlu0 %918
      %920 = vrot.lane.b32.xlu0 %v585, 32
      %v921 = vpop.permute.xlu0 %920
      %922 = vrot.lane.b32.xlu0 %v590, 32
      %v923 = vpop.permute.xlu0 %922
      %924 = vrot.lane.b32.xlu0 %v595, 32
      %v925 = vpop.permute.xlu0 %924
      %926 = vrot.lane.b32.xlu0 %v600, 32
      %v927 = vpop.permute.xlu0 %926
      %928 = vrot.lane.b32.xlu0 %v605, 32
      %v929 = vpop.permute.xlu0 %928
      %930 = vrot.lane.b32.xlu0 %v610, 32
      %v931 = vpop.permute.xlu0 %930
      %932 = vrot.lane.b32.xlu0 %v615, 32
      %v933 = vpop.permute.xlu0 %932
      %934 = vrot.lane.b32.xlu0 %v620, 32
      %v935 = vpop.permute.xlu0 %934
      %936 = vrot.lane.b32.xlu0 %v625, 32
      %v937 = vpop.permute.xlu0 %936
      %938 = vrot.lane.b32.xlu0 %v630, 32
      %v939 = vpop.permute.xlu0 %938
      %940 = vrot.lane.b32.xlu0 %v635, 32
      %v941 = vpop.permute.xlu0 %940
      %942 = vrot.lane.b32.xlu0 %v640, 32
      %v943 = vpop.permute.xlu0 %942
      %944 = vrot.lane.b32.xlu0 %v645, 32
      %v945 = vpop.permute.xlu0 %944
      %946 = vrot.lane.b32.xlu0 %v650, 32
      %v947 = vpop.permute.xlu0 %946
      %948 = vrot.lane.b32.xlu0 %v655, 32
      %v949 = vpop.permute.xlu0 %948
      %950 = vrot.lane.b32.xlu0 %v660, 32
      %v951 = vpop.permute.xlu0 %950
      %952 = vrot.lane.b32.xlu0 %v665, 32
      %v953 = vpop.permute.xlu0 %952
      %954 = vrot.lane.b32.xlu0 %v670, 32
      %v955 = vpop.permute.xlu0 %954
      %956 = vrot.lane.b32.xlu0 %v675, 32
      %v957 = vpop.permute.xlu0 %956
      %958 = vrot.lane.b32.xlu0 %v680, 32
      %v959 = vpop.permute.xlu0 %958
      %960 = vrot.lane.b32.xlu0 %v685, 32
      %v961 = vpop.permute.xlu0 %960
      %1010 = vrot.lane.b32.xlu0 %v820, 64
      %v1011 = vpop.permute.xlu0 %1010
      %1012 = vrot.lane.b32.xlu0 %v882, 64
      %v1013 = vpop.permute.xlu0 %1012
      %1014 = vrot.lane.b32.xlu0 %v823, 64
      %v1015 = vpop.permute.xlu0 %1014
      %1016 = vrot.lane.b32.xlu0 %v883, 64
      %v1017 = vpop.permute.xlu0 %1016
      %1018 = vrot.lane.b32.xlu0 %v826, 64
      %v1019 = vpop.permute.xlu0 %1018
      %1020 = vrot.lane.b32.xlu0 %v884, 64
      %v1021 = vpop.permute.xlu0 %1020
      %1022 = vrot.lane.b32.xlu0 %v829, 64
      %v1023 = vpop.permute.xlu0 %1022
      %1024 = vrot.lane.b32.xlu0 %v885, 64
      %v1025 = vpop.permute.xlu0 %1024
      %1026 = vrot.lane.b32.xlu0 %v832, 64
      %v1027 = vpop.permute.xlu0 %1026
      %1028 = vrot.lane.b32.xlu0 %v886, 64
      %v1029 = vpop.permute.xlu0 %1028
      %1030 = vrot.lane.b32.xlu0 %v835, 64
      %v1031 = vpop.permute.xlu0 %1030
      %1032 = vrot.lane.b32.xlu0 %v887, 64
      %v1033 = vpop.permute.xlu0 %1032
      %1034 = vrot.lane.b32.xlu0 %v838, 64
      %v1035 = vpop.permute.xlu0 %1034
      %1036 = vrot.lane.b32.xlu0 %v888, 64
      %v1037 = vpop.permute.xlu0 %1036
      %1038 = vrot.lane.b32.xlu0 %v841, 64
      %v1039 = vpop.permute.xlu0 %1038
      %1040 = vrot.lane.b32.xlu0 %v889, 64
      %v1041 = vpop.permute.xlu0 %1040
      %1042 = vrot.lane.b32.xlu0 %v844, 64
      %v1043 = vpop.permute.xlu0 %1042
      %1044 = vrot.lane.b32.xlu0 %v890, 64
      %v1045 = vpop.permute.xlu0 %1044
      %1046 = vrot.lane.b32.xlu0 %v847, 64
      %v1047 = vpop.permute.xlu0 %1046
      %1048 = vrot.lane.b32.xlu0 %v891, 64
      %v1049 = vpop.permute.xlu0 %1048
      %1050 = vrot.lane.b32.xlu0 %v850, 64
      %v1051 = vpop.permute.xlu0 %1050
      %1052 = vrot.lane.b32.xlu0 %v892, 64
      %v1053 = vpop.permute.xlu0 %1052
      %1054 = vrot.lane.b32.xlu0 %v853, 64
      %v1055 = vpop.permute.xlu0 %1054
      %1056 = vrot.lane.b32.xlu0 %v893, 64
      %v1057 = vpop.permute.xlu0 %1056
      %1058 = vrot.lane.b32.xlu0 %v856, 64
      %v1059 = vpop.permute.xlu0 %1058
      %1060 = vrot.lane.b32.xlu0 %v894, 64
      %v1061 = vpop.permute.xlu0 %1060
      %1062 = vrot.lane.b32.xlu0 %v859, 64
      %v1063 = vpop.permute.xlu0 %1062
      %1064 = vrot.lane.b32.xlu0 %v895, 64
      %v1065 = vpop.permute.xlu0 %1064
      %1066 = vrot.lane.b32.xlu0 %v862, 64
      %v1067 = vpop.permute.xlu0 %1066
      %1068 = vrot.lane.b32.xlu0 %v896, 64
      %v1069 = vpop.permute.xlu0 %1068
      %1070 = vrot.lane.b32.xlu0 %v865, 64
      %v1071 = vpop.permute.xlu0 %1070
      %1072 = vrot.lane.b32.xlu0 %v897, 64
      %v1073 = vpop.permute.xlu0 %1072
      %vm1106 = vcmask 261120
      %v1107 = vsel %vm1106, %v801, %v899
      %v1108 = vsel %vm1106, %v723, %v901
      %v1109 = vsel %vm1106, %v802, %v903
      %v1110 = vsel %vm1106, %v726, %v905
      %v1111 = vsel %vm1106, %v803, %v907
      %v1112 = vsel %vm1106, %v729, %v909
      %v1113 = vsel %vm1106, %v804, %v911
      %v1114 = vsel %vm1106, %v732, %v913
      %v1115 = vsel %vm1106, %v805, %v915
      %v1116 = vsel %vm1106, %v735, %v917
      %v1117 = vsel %vm1106, %v806, %v919
      %v1118 = vsel %vm1106, %v738, %v921
      %v1119 = vsel %vm1106, %v807, %v923
      %v1120 = vsel %vm1106, %v741, %v925
      %v1121 = vsel %vm1106, %v808, %v927
      %v1122 = vsel %vm1106, %v744, %v929
      %v1123 = vsel %vm1106, %v809, %v931
      %v1124 = vsel %vm1106, %v747, %v933
      %v1125 = vsel %vm1106, %v810, %v935
      %v1126 = vsel %vm1106, %v750, %v937
      %v1127 = vsel %vm1106, %v811, %v939
      %v1128 = vsel %vm1106, %v753, %v941
      %v1129 = vsel %vm1106, %v812, %v943
      %v1130 = vsel %vm1106, %v756, %v945
      %v1131 = vsel %vm1106, %v813, %v947
      %v1132 = vsel %vm1106, %v759, %v949
      %v1133 = vsel %vm1106, %v814, %v951
      %v1134 = vsel %vm1106, %v762, %v953
      %v1135 = vsel %vm1106, %v815, %v955
      %v1136 = vsel %vm1106, %v765, %v957
      %v1137 = vsel %vm1106, %v816, %v959
      %v1138 = vsel %vm1106, %v768, %v961
      %vm1139 = vcmask 523264
      %v1140 = vsel %vm1139, %v1107, %v1011
      %v1141 = vsel %vm1139, %v1108, %v1013
      %v1142 = vsel %vm1139, %v1109, %v1015
      %v1143 = vsel %vm1139, %v1110, %v1017
      %v1144 = vsel %vm1139, %v1111, %v1019
      %v1145 = vsel %vm1139, %v1112, %v1021
      %v1146 = vsel %vm1139, %v1113, %v1023
      %v1147 = vsel %vm1139, %v1114, %v1025
      %v1148 = vsel %vm1139, %v1115, %v1027
      %v1149 = vsel %vm1139, %v1116, %v1029
      %v1150 = vsel %vm1139, %v1117, %v1031
      %v1151 = vsel %vm1139, %v1118, %v1033
      %v1152 = vsel %vm1139, %v1119, %v1035
      %v1153 = vsel %vm1139, %v1120, %v1037
      %v1154 = vsel %vm1139, %v1121, %v1039
      %v1155 = vsel %vm1139, %v1122, %v1041
      %v1156 = vsel %vm1139, %v1123, %v1043
      %v1157 = vsel %vm1139, %v1124, %v1045
      %v1158 = vsel %vm1139, %v1125, %v1047
      %v1159 = vsel %vm1139, %v1126, %v1049
      %v1160 = vsel %vm1139, %v1127, %v1051
      %v1161 = vsel %vm1139, %v1128, %v1053
      %v1162 = vsel %vm1139, %v1129, %v1055
      %v1163 = vsel %vm1139, %v1130, %v1057
      %v1164 = vsel %vm1139, %v1131, %v1059
      %v1165 = vsel %vm1139, %v1132, %v1061
      %v1166 = vsel %vm1139, %v1133, %v1063
      %v1167 = vsel %vm1139, %v1134, %v1065
      %v1168 = vsel %vm1139, %v1135, %v1067
      %v1169 = vsel %vm1139, %v1136, %v1069
      %v1170 = vsel %vm1139, %v1137, %v1071
      %v1171 = vsel %vm1139, %v1138, %v1073
      %s1172 = scalar_lea.vmem [#allocation2], 16
      %vm1173 = vcmask 785408
      %1174 = vst.msk [vmem:[%s1172] sm:$0xff] %vm1173, %v1140
      %1175 = vst.msk [vmem:[%s1172 + $0x8] sm:$0xff] %vm1173, %v1141
      %1176 = vst.msk [vmem:[%s1172 + $0x10] sm:$0xff] %vm1173, %v1142
      %1177 = vst.msk [vmem:[%s1172 + $0x18] sm:$0xff] %vm1173, %v1143
      %1178 = vst.msk [vmem:[%s1172 + $0x20] sm:$0xff] %vm1173, %v1144
      %1179 = vst.msk [vmem:[%s1172 + $0x28] sm:$0xff] %vm1173, %v1145
      %1180 = vst.msk [vmem:[%s1172 + $0x30] sm:$0xff] %vm1173, %v1146
      %1181 = vst.msk [vmem:[%s1172 + $0x38] sm:$0xff] %vm1173, %v1147
      %1182 = vst.msk [vmem:[%s1172 + $0x40] sm:$0xff] %vm1173, %v1148
      %1183 = vst.msk [vmem:[%s1172 + $0x48] sm:$0xff] %vm1173, %v1149
      %1184 = vst.msk [vmem:[%s1172 + $0x50] sm:$0xff] %vm1173, %v1150
      %1185 = vst.msk [vmem:[%s1172 + $0x58] sm:$0xff] %vm1173, %v1151
      %1186 = vst.msk [vmem:[%s1172 + $0x60] sm:$0xff] %vm1173, %v1152
      %1187 = vst.msk [vmem:[%s1172 + $0x68] sm:$0xff] %vm1173, %v1153
      %1188 = vst.msk [vmem:[%s1172 + $0x70] sm:$0xff] %vm1173, %v1154
      %1189 = vst.msk [vmem:[%s1172 + $0x78] sm:$0xff] %vm1173, %v1155
      %1190 = vst.msk [vmem:[%s1172 + $0x80] sm:$0xff] %vm1173, %v1156
      %1191 = vst.msk [vmem:[%s1172 + $0x88] sm:$0xff] %vm1173, %v1157
      %1192 = vst.msk [vmem:[%s1172 + $0x90] sm:$0xff] %vm1173, %v1158
      %1193 = vst.msk [vmem:[%s1172 + $0x98] sm:$0xff] %vm1173, %v1159
      %1194 = vst.msk [vmem:[%s1172 + $0xa0] sm:$0xff] %vm1173, %v1160
      %1195 = vst.msk [vmem:[%s1172 + $0xa8] sm:$0xff] %vm1173, %v1161
      %1196 = vst.msk [vmem:[%s1172 + $0xb0] sm:$0xff] %vm1173, %v1162
      %1197 = vst.msk [vmem:[%s1172 + $0xb8] sm:$0xff] %vm1173, %v1163
      %1198 = vst.msk [vmem:[%s1172 + $0xc0] sm:$0xff] %vm1173, %v1164
      %1199 = vst.msk [vmem:[%s1172 + $0xc8] sm:$0xff] %vm1173, %v1165
      %1200 = vst.msk [vmem:[%s1172 + $0xd0] sm:$0xff] %vm1173, %v1166
      %1201 = vst.msk [vmem:[%s1172 + $0xd8] sm:$0xff] %vm1173, %v1167
      %1202 = vst.msk [vmem:[%s1172 + $0xe0] sm:$0xff] %vm1173, %v1168
      %1203 = vst.msk [vmem:[%s1172 + $0xe8] sm:$0xff] %vm1173, %v1169
      %1204 = vst.msk [vmem:[%s1172 + $0xf0] sm:$0xff] %vm1173, %v1170
      %1205 = vst.msk [vmem:[%s1172 + $0xf8] sm:$0xff] %vm1173, %v1171
      %v1206 = vld [vmem:[%s312] sm:$0xff]
      %v1207 = vld [vmem:[%s312 + $0x8] sm:$0xff]
      %v1208 = vld [vmem:[%s312 + $0x10] sm:$0xff]
      %v1209 = vld [vmem:[%s312 + $0x18] sm:$0xff]
      %v1211 = vsel %vm362, %v1206, 0
      %v1214 = vsel %vm362, %v1207, 0
      %v1217 = vsel %vm362, %v1208, 0
      %v1220 = vsel %vm362, %v1209, 0
      %1222 = vmatprep.subr.mxu0 0.0
      %1223 = vmatpush1.msra.mxu0 0.0
      %1224 = vmatprep.subr.mxu0 0.0
      %1225 = vmatpush1.msra.mxu0 0.0
      %1226 = vmatprep.subr.mxu0 0.0
      %1227 = vmatpush1.msra.mxu0 0.0
      %1228 = vmatprep.subr.mxu0 0.0
      %1229 = vmatpush1.msra.mxu0 0.0
      %1230 = vmatprep.subr.mxu0 0.0
      %1231 = vmatpush1.msra.mxu0 0.0
      %1232 = vmatprep.subr.mxu0 0.0
      %1233 = vmatpush1.msra.mxu0 0.0
      %1234 = vmatprep.subr.mxu0 0.0
      %1235 = vmatpush1.msra.mxu0 0.0
      %1236 = vmatprep.subr.mxu0 0.0
      %1237 = vmatpush1.msra.mxu0 0.0
      %1238 = vmatprep.subr.mxu0 0.0
      %1239 = vmatpush1.msra.mxu0 0.0
      %1240 = vmatprep.subr.mxu0 0.0
      %1241 = vmatpush1.msra.mxu0 0.0
      %1242 = vmatprep.subr.mxu0 0.0
      %1243 = vmatpush1.msra.mxu0 0.0
      %1244 = vmatprep.subr.mxu0 0.0
      %1245 = vmatpush1.msra.mxu0 0.0
      %1246 = vmatprep.subr.mxu0 0.0
      %1247 = vmatpush1.msra.mxu0 0.0
      %1248 = vmatprep.subr.mxu0 0.0
      %1249 = vmatpush1.msra.mxu0 0.0
      %1250 = vmatprep.subr.mxu0 0.0
      %1251 = vmatpush1.msra.mxu0 0.0
      %1252 = vmatprep.subr.mxu0 0.0
      %1253 = vmatpush1.msra.mxu0 %v461
      %1254 = vmatprep.subr.mxu0 0.0
      %1255 = vmatpush2.msra.mxu0 0.0
      %1256 = vmatprep.subr.mxu0 0.0
      %1257 = vmatpush2.msra.mxu0 0.0
      %1258 = vmatprep.subr.mxu0 0.0
      %1259 = vmatpush2.msra.mxu0 0.0
      %1260 = vmatprep.subr.mxu0 0.0
      %1261 = vmatpush2.msra.mxu0 0.0
      %1262 = vmatprep.subr.mxu0 0.0
      %1263 = vmatpush2.msra.mxu0 0.0
      %1264 = vmatprep.subr.mxu0 0.0
      %1265 = vmatpush2.msra.mxu0 0.0
      %1266 = vmatprep.subr.mxu0 0.0
      %1267 = vmatpush2.msra.mxu0 0.0
      %1268 = vmatprep.subr.mxu0 0.0
      %1269 = vmatpush2.msra.mxu0 0.0
      %1270 = vmatprep.subr.mxu0 0.0
      %1271 = vmatpush2.msra.mxu0 0.0
      %1272 = vmatprep.subr.mxu0 0.0
      %1273 = vmatpush2.msra.mxu0 0.0
      %1274 = vmatprep.subr.mxu0 0.0
      %1275 = vmatpush2.msra.mxu0 0.0
      %1276 = vmatprep.subr.mxu0 0.0
      %1277 = vmatpush2.msra.mxu0 0.0
      %1278 = vmatprep.subr.mxu0 0.0
      %1279 = vmatpush2.msra.mxu0 0.0
      %1280 = vmatprep.subr.mxu0 0.0
      %1281 = vmatpush2.msra.mxu0 0.0
      %1282 = vmatprep.subr.mxu0 0.0
      %1283 = vmatpush2.msra.mxu0 0.0
      %1284 = vmatprep.subr.mxu0 0.0
      %1285 = vmatpush2.msra.mxu0 0.0
      %1286 = vmatprep.mubr.f32.mxu0 0.0
      %1287 = vmatmul.mubr.f32.gmra.mxu0 %v1211
      %v1288 = vpop.f32.mrf.mxu0
      %v1289 = vadd.f32 %v360, %v1288
      %v1290 = vpop.f32.mrf.mxu0
      %1291 = vmatprep.mubr.f32.mxu0 0.0
      %1292 = vmatmul.mubr.f32.gmra.mxu0 %v1214
      %v1293 = vpop.f32.mrf.mxu0
      %v1294 = vadd.f32 %v360, %v1293
      %v1295 = vpop.f32.mrf.mxu0
      %1296 = vmatprep.mubr.f32.mxu0 0.0
      %1297 = vmatmul.mubr.f32.gmra.mxu0 %v1217
      %v1298 = vpop.f32.mrf.mxu0
      %v1299 = vadd.f32 %v360, %v1298
      %v1300 = vpop.f32.mrf.mxu0
      %1301 = vmatprep.mubr.f32.mxu0 0.0
      %1302 = vmatmul.mubr.f32.gmra.mxu0 %v1220
      %v1303 = vpop.f32.mrf.mxu0
      %v1304 = vadd.f32 %v360, %v1303
      %v1305 = vpop.f32.mrf.mxu0
      %1306 = vdwg.mxu0
      %p1307 = scmp.eq.s32.totalorder %s22, 0
      %s1308 = scalar_select %p1307, 1, 0
      %v1309 = vstv %s1308
      %vm1310 = vcmp.eq.s32.totalorder %v1309, 1
      %v1311 = vsel %vm1310, 0.0, %v1289
      %v1312 = vsel %vm1310, 0.0, %v1294
      %v1313 = vsel %vm1310, 0.0, %v1299
      %v1314 = vsel %vm1310, 0.0, %v1304
      %v1317 = vrot.slane %v1311, 7
      %v1318 = vrot.slane %v1312, 7
      %v1319 = vsel %vm720, %v1317, %v1318
      %v1322 = vsel %vm720, 0.0, %v1317
      %v1323 = vrot.slane %v1311, 1
      %v1324 = vrot.slane %v1312, 1
      %v1325 = vsel %vm817, %v1323, %v1324
      %v1327 = vsel %vm817, %v1324, 0.0
      %1328 = vrot.lane.b32.xlu0 %v1311, 32
      %v1329 = vpop.permute.xlu0 %1328
      %1330 = vrot.lane.b32.xlu0 %v1312, 32
      %v1331 = vpop.permute.xlu0 %1330
      %1335 = vrot.lane.b32.xlu0 %v1325, 64
      %v1336 = vpop.permute.xlu0 %1335
      %1337 = vrot.lane.b32.xlu0 %v1327, 64
      %v1338 = vpop.permute.xlu0 %1337
      %v1341 = vsel %vm1106, %v1322, %v1329
      %v1342 = vsel %vm1106, %v1319, %v1331
      %v1343 = vsel %vm1139, %v1341, %v1336
      %v1344 = vsel %vm1139, %v1342, %v1338
      %1345 = vst.msk [vmem:[#allocation2] sm:$0xff] %vm1173, %v1343
      %1346 = vst.msk [vmem:[#allocation2 + $0x8] sm:$0xff] %vm1173, %v1344
      %v1349 = vrot.slane %v1313, 7
      %v1350 = vrot.slane %v1314, 7
      %v1351 = vsel %vm720, %v1349, %v1350
      %v1354 = vsel %vm720, 0.0, %v1349
      %v1355 = vrot.slane %v1313, 1
      %v1356 = vrot.slane %v1314, 1
      %v1357 = vsel %vm817, %v1355, %v1356
      %v1359 = vsel %vm817, %v1356, 0.0
      %1360 = vrot.lane.b32.xlu0 %v1313, 32
      %v1361 = vpop.permute.xlu0 %1360
      %1362 = vrot.lane.b32.xlu0 %v1314, 32
      %v1363 = vpop.permute.xlu0 %1362
      %1367 = vrot.lane.b32.xlu0 %v1357, 64
      %v1368 = vpop.permute.xlu0 %1367
      %1369 = vrot.lane.b32.xlu0 %v1359, 64
      %v1370 = vpop.permute.xlu0 %1369
      %v1373 = vsel %vm1106, %v1354, %v1361
      %v1374 = vsel %vm1106, %v1351, %v1363
      %v1375 = vsel %vm1139, %v1373, %v1368
      %v1376 = vsel %vm1139, %v1374, %v1370
      %s1377 = scalar_lea.vmem [#allocation2], 272
      %1378 = vst.msk [vmem:[%s1377] sm:$0xff] %vm1173, %v1375
      %1379 = vst.msk [vmem:[%s1377 + $0x8] sm:$0xff] %vm1173, %v1376
      %v1380 = vld [vmem:[#allocation2] sm:$0xff]
      %v1381 = vld [vmem:[#allocation2 + $0x8] sm:$0xff]
      %v1382 = vld [vmem:[#allocation2 + $0x10] sm:$0xff]
      %v1383 = vld [vmem:[#allocation2 + $0x18] sm:$0xff]
      %v1384 = vld [vmem:[#allocation2 + $0x20] sm:$0xff]
      %v1385 = vld [vmem:[#allocation2 + $0x28] sm:$0xff]
      %v1386 = vld [vmem:[#allocation2 + $0x30] sm:$0xff]
      %v1387 = vld [vmem:[#allocation2 + $0x38] sm:$0xff]
      %v1388 = vld [vmem:[#allocation2 + $0x40] sm:$0xff]
      %v1389 = vld [vmem:[#allocation2 + $0x48] sm:$0xff]
      %v1390 = vld [vmem:[#allocation2 + $0x50] sm:$0xff]
      %v1391 = vld [vmem:[#allocation2 + $0x58] sm:$0xff]
      %v1392 = vld [vmem:[#allocation2 + $0x60] sm:$0xff]
      %v1393 = vld [vmem:[#allocation2 + $0x68] sm:$0xff]
      %v1394 = vld [vmem:[#allocation2 + $0x70] sm:$0xff]
      %v1395 = vld [vmem:[#allocation2 + $0x78] sm:$0xff]
      %v1396 = vld [vmem:[#allocation2 + $0x80] sm:$0xff]
      %v1397 = vld [vmem:[#allocation2 + $0x88] sm:$0xff]
      %v1398 = vld [vmem:[#allocation2 + $0x90] sm:$0xff]
      %v1399 = vld [vmem:[#allocation2 + $0x98] sm:$0xff]
      %v1400 = vld [vmem:[#allocation2 + $0xa0] sm:$0xff]
      %v1401 = vld [vmem:[#allocation2 + $0xa8] sm:$0xff]
      %v1402 = vld [vmem:[#allocation2 + $0xb0] sm:$0xff]
      %v1403 = vld [vmem:[#allocation2 + $0xb8] sm:$0xff]
      %v1404 = vld [vmem:[#allocation2 + $0xc0] sm:$0xff]
      %v1405 = vld [vmem:[#allocation2 + $0xc8] sm:$0xff]
      %v1406 = vld [vmem:[#allocation2 + $0xd0] sm:$0xff]
      %v1407 = vld [vmem:[#allocation2 + $0xd8] sm:$0xff]
      %v1408 = vld [vmem:[#allocation2 + $0xe0] sm:$0xff]
      %v1409 = vld [vmem:[#allocation2 + $0xe8] sm:$0xff]
      %v1410 = vld [vmem:[#allocation2 + $0xf0] sm:$0xff]
      %v1411 = vld [vmem:[#allocation2 + $0xf8] sm:$0xff]
      %v1412 = vld [vmem:[%s4] sm:$0xff]
      %v1413 = vld [vmem:[%s4 + $0x8] sm:$0xff]
      %v1414 = vld [vmem:[%s4 + $0x10] sm:$0xff]
      %v1415 = vld [vmem:[%s4 + $0x18] sm:$0xff]
      %v1416 = vld [vmem:[%s4 + $0x20] sm:$0xff]
      %v1417 = vld [vmem:[%s4 + $0x28] sm:$0xff]
      %v1418 = vld [vmem:[%s4 + $0x30] sm:$0xff]
      %v1419 = vld [vmem:[%s4 + $0x38] sm:$0xff]
      %v1420 = vld [vmem:[%s4 + $0x40] sm:$0xff]
      %v1421 = vld [vmem:[%s4 + $0x48] sm:$0xff]
      %v1422 = vld [vmem:[%s4 + $0x50] sm:$0xff]
      %v1423 = vld [vmem:[%s4 + $0x58] sm:$0xff]
      %v1424 = vld [vmem:[%s1172] sm:$0xff]
      %v1425 = vld [vmem:[%s1172 + $0x8] sm:$0xff]
      %v1426 = vld [vmem:[%s1172 + $0x10] sm:$0xff]
      %v1427 = vld [vmem:[%s1172 + $0x18] sm:$0xff]
      %v1428 = vld [vmem:[%s1172 + $0x20] sm:$0xff]
      %v1429 = vld [vmem:[%s1172 + $0x28] sm:$0xff]
      %v1430 = vld [vmem:[%s1172 + $0x30] sm:$0xff]
      %v1431 = vld [vmem:[%s1172 + $0x38] sm:$0xff]
      %v1432 = vld [vmem:[%s1172 + $0x40] sm:$0xff]
      %v1433 = vld [vmem:[%s1172 + $0x48] sm:$0xff]
      %v1434 = vld [vmem:[%s1172 + $0x50] sm:$0xff]
      %v1435 = vld [vmem:[%s1172 + $0x58] sm:$0xff]
      %v1436 = vld [vmem:[%s1172 + $0x60] sm:$0xff]
      %v1437 = vld [vmem:[%s1172 + $0x68] sm:$0xff]
      %v1438 = vld [vmem:[%s1172 + $0x70] sm:$0xff]
      %v1439 = vld [vmem:[%s1172 + $0x78] sm:$0xff]
      %v1440 = vld [vmem:[%s1172 + $0x80] sm:$0xff]
      %v1441 = vld [vmem:[%s1172 + $0x88] sm:$0xff]
      %v1442 = vld [vmem:[%s1172 + $0x90] sm:$0xff]
      %v1443 = vld [vmem:[%s1172 + $0x98] sm:$0xff]
      %v1444 = vld [vmem:[%s1172 + $0xa0] sm:$0xff]
      %v1445 = vld [vmem:[%s1172 + $0xa8] sm:$0xff]
      %v1446 = vld [vmem:[%s1172 + $0xb0] sm:$0xff]
      %v1447 = vld [vmem:[%s1172 + $0xb8] sm:$0xff]
      %v1448 = vld [vmem:[%s1172 + $0xc0] sm:$0xff]
      %v1449 = vld [vmem:[%s1172 + $0xc8] sm:$0xff]
      %v1450 = vld [vmem:[%s1172 + $0xd0] sm:$0xff]
      %v1451 = vld [vmem:[%s1172 + $0xd8] sm:$0xff]
      %v1452 = vld [vmem:[%s1172 + $0xe0] sm:$0xff]
      %v1453 = vld [vmem:[%s1172 + $0xe8] sm:$0xff]
      %v1454 = vld [vmem:[%s1172 + $0xf0] sm:$0xff]
      %v1455 = vld [vmem:[%s1172 + $0xf8] sm:$0xff]
      %s1456 = scalar_lea.vmem %s4, 96
      %v1457 = vld [vmem:[%s1456] sm:$0xff]
      %v1458 = vld [vmem:[%s1456 + $0x8] sm:$0xff]
      %v1459 = vld [vmem:[%s1456 + $0x10] sm:$0xff]
      %v1460 = vld [vmem:[%s1456 + $0x18] sm:$0xff]
      %v1461 = vld [vmem:[%s1456 + $0x20] sm:$0xff]
      %v1462 = vld [vmem:[%s1456 + $0x28] sm:$0xff]
      %v1463 = vld [vmem:[%s1456 + $0x30] sm:$0xff]
      %v1464 = vld [vmem:[%s1456 + $0x38] sm:$0xff]
      %v1465 = vld [vmem:[%s1456 + $0x40] sm:$0xff]
      %v1466 = vld [vmem:[%s1456 + $0x48] sm:$0xff]
      %v1467 = vld [vmem:[%s1456 + $0x50] sm:$0xff]
      %v1468 = vld [vmem:[%s1456 + $0x58] sm:$0xff]
      %v1470 = vsel %vm1173, %v1424, 0
      %v1473 = vsel %vm1173, %v1425, 0
      %v1476 = vsel %vm1173, %v1426, 0
      %v1479 = vsel %vm1173, %v1427, 0
      %v1482 = vsel %vm1173, %v1428, 0
      %v1485 = vsel %vm1173, %v1429, 0
      %v1488 = vsel %vm1173, %v1430, 0
      %v1491 = vsel %vm1173, %v1431, 0
      %v1494 = vsel %vm1173, %v1432, 0
      %v1497 = vsel %vm1173, %v1433, 0
      %v1500 = vsel %vm1173, %v1434, 0
      %v1503 = vsel %vm1173, %v1435, 0
      %v1506 = vsel %vm1173, %v1436, 0
      %v1509 = vsel %vm1173, %v1437, 0
      %v1512 = vsel %vm1173, %v1438, 0
      %v1515 = vsel %vm1173, %v1439, 0
      %v1518 = vsel %vm1173, %v1440, 0
      %v1521 = vsel %vm1173, %v1441, 0
      %v1524 = vsel %vm1173, %v1442, 0
      %v1527 = vsel %vm1173, %v1443, 0
      %v1530 = vsel %vm1173, %v1444, 0
      %v1533 = vsel %vm1173, %v1445, 0
      %v1536 = vsel %vm1173, %v1446, 0
      %v1539 = vsel %vm1173, %v1447, 0
      %v1542 = vsel %vm1173, %v1448, 0
      %v1545 = vsel %vm1173, %v1449, 0
      %v1548 = vsel %vm1173, %v1450, 0
      %v1551 = vsel %vm1173, %v1451, 0
      %v1554 = vsel %vm1173, %v1452, 0
      %v1557 = vsel %vm1173, %v1453, 0
      %v1560 = vsel %vm1173, %v1454, 0
      %v1563 = vsel %vm1173, %v1455, 0
      %1565 = vmatprep.subr.mxu0 0.0
      %1566 = vmatpush1.msra.mxu0 0.0
      %1567 = vmatprep.subr.mxu0 0.0
      %1568 = vmatpush1.msra.mxu0 0.0
      %1569 = vmatprep.subr.mxu0 0.0
      %1570 = vmatpush1.msra.mxu0 0.0
      %1571 = vmatprep.subr.mxu0 0.0
      %1572 = vmatpush1.msra.mxu0 0.0
      %1573 = vmatprep.subr.mxu0 0.0
      %1574 = vmatpush1.msra.mxu0 %v1468
      %1575 = vmatprep.subr.mxu0 0.0
      %1576 = vmatpush1.msra.mxu0 %v1467
      %1577 = vmatprep.subr.mxu0 0.0
      %1578 = vmatpush1.msra.mxu0 %v1466
      %1579 = vmatprep.subr.mxu0 0.0
      %1580 = vmatpush1.msra.mxu0 %v1465
      %1581 = vmatprep.subr.mxu0 0.0
      %1582 = vmatpush1.msra.mxu0 %v1464
      %1583 = vmatprep.subr.mxu0 0.0
      %1584 = vmatpush1.msra.mxu0 %v1463
      %1585 = vmatprep.subr.mxu0 0.0
      %1586 = vmatpush1.msra.mxu0 %v1462
      %1587 = vmatprep.subr.mxu0 0.0
      %1588 = vmatpush1.msra.mxu0 %v1461
      %1589 = vmatprep.subr.mxu0 0.0
      %1590 = vmatpush1.msra.mxu0 %v1460
      %1591 = vmatprep.subr.mxu0 0.0
      %1592 = vmatpush1.msra.mxu0 %v1459
      %1593 = vmatprep.subr.mxu0 0.0
      %1594 = vmatpush1.msra.mxu0 %v1458
      %1595 = vmatprep.subr.mxu0 0.0
      %1596 = vmatpush1.msra.mxu0 %v1457
      %1597 = vmatprep.subr.mxu0 0.0
      %1598 = vmatpush2.msra.mxu0 0.0
      %1599 = vmatprep.subr.mxu0 0.0
      %1600 = vmatpush2.msra.mxu0 0.0
      %1601 = vmatprep.subr.mxu0 0.0
      %1602 = vmatpush2.msra.mxu0 0.0
      %1603 = vmatprep.subr.mxu0 0.0
      %1604 = vmatpush2.msra.mxu0 0.0
      %1605 = vmatprep.subr.mxu0 0.0
      %1606 = vmatpush2.msra.mxu0 0.0
      %1607 = vmatprep.subr.mxu0 0.0
      %1608 = vmatpush2.msra.mxu0 0.0
      %1609 = vmatprep.subr.mxu0 0.0
      %1610 = vmatpush2.msra.mxu0 0.0
      %1611 = vmatprep.subr.mxu0 0.0
      %1612 = vmatpush2.msra.mxu0 0.0
      %1613 = vmatprep.subr.mxu0 0.0
      %1614 = vmatpush2.msra.mxu0 0.0
      %1615 = vmatprep.subr.mxu0 0.0
      %1616 = vmatpush2.msra.mxu0 0.0
      %1617 = vmatprep.subr.mxu0 0.0
      %1618 = vmatpush2.msra.mxu0 0.0
      %1619 = vmatprep.subr.mxu0 0.0
      %1620 = vmatpush2.msra.mxu0 0.0
      %1621 = vmatprep.subr.mxu0 0.0
      %1622 = vmatpush2.msra.mxu0 0.0
      %1623 = vmatprep.subr.mxu0 0.0
      %1624 = vmatpush2.msra.mxu0 0.0
      %1625 = vmatprep.subr.mxu0 0.0
      %1626 = vmatpush2.msra.mxu0 0.0
      %1627 = vmatprep.subr.mxu0 0.0
      %1628 = vmatpush2.msra.mxu0 0.0
      %1629 = vmatprep.mubr.f32.mxu0 0.0
      %1630 = vmatmul.mubr.f32.gmra.mxu0 %v1470
      %v1631 = vpop.f32.mrf.mxu0
      %v1632 = vadd.f32 0.0, %v1631
      %v1633 = vpop.f32.mrf.mxu0
      %1634 = vmatprep.mubr.f32.mxu0 0.0
      %1635 = vmatmul.mubr.f32.gmra.mxu0 %v1473
      %v1636 = vpop.f32.mrf.mxu0
      %v1637 = vadd.f32 0.0, %v1636
      %v1638 = vpop.f32.mrf.mxu0
      %1639 = vmatprep.mubr.f32.mxu0 0.0
      %1640 = vmatmul.mubr.f32.gmra.mxu0 %v1476
      %v1641 = vpop.f32.mrf.mxu0
      %v1642 = vadd.f32 0.0, %v1641
      %v1643 = vpop.f32.mrf.mxu0
      %1644 = vmatprep.mubr.f32.mxu0 0.0
      %1645 = vmatmul.mubr.f32.gmra.mxu0 %v1479
      %v1646 = vpop.f32.mrf.mxu0
      %v1647 = vadd.f32 0.0, %v1646
      %v1648 = vpop.f32.mrf.mxu0
      %1649 = vmatprep.mubr.f32.mxu0 0.0
      %1650 = vmatmul.mubr.f32.gmra.mxu0 %v1482
      %v1651 = vpop.f32.mrf.mxu0
      %v1652 = vadd.f32 0.0, %v1651
      %v1653 = vpop.f32.mrf.mxu0
      %1654 = vmatprep.mubr.f32.mxu0 0.0
      %1655 = vmatmul.mubr.f32.gmra.mxu0 %v1485
      %v1656 = vpop.f32.mrf.mxu0
      %v1657 = vadd.f32 0.0, %v1656
      %v1658 = vpop.f32.mrf.mxu0
      %1659 = vmatprep.mubr.f32.mxu0 0.0
      %1660 = vmatmul.mubr.f32.gmra.mxu0 %v1488
      %v1661 = vpop.f32.mrf.mxu0
      %v1662 = vadd.f32 0.0, %v1661
      %v1663 = vpop.f32.mrf.mxu0
      %1664 = vmatprep.mubr.f32.mxu0 0.0
      %1665 = vmatmul.mubr.f32.gmra.mxu0 %v1491
      %v1666 = vpop.f32.mrf.mxu0
      %v1667 = vadd.f32 0.0, %v1666
      %v1668 = vpop.f32.mrf.mxu0
      %1669 = vmatprep.mubr.f32.mxu0 0.0
      %1670 = vmatmul.mubr.f32.gmra.mxu0 %v1494
      %v1671 = vpop.f32.mrf.mxu0
      %v1672 = vadd.f32 0.0, %v1671
      %v1673 = vpop.f32.mrf.mxu0
      %1674 = vmatprep.mubr.f32.mxu0 0.0
      %1675 = vmatmul.mubr.f32.gmra.mxu0 %v1497
      %v1676 = vpop.f32.mrf.mxu0
      %v1677 = vadd.f32 0.0, %v1676
      %v1678 = vpop.f32.mrf.mxu0
      %1679 = vmatprep.mubr.f32.mxu0 0.0
      %1680 = vmatmul.mubr.f32.gmra.mxu0 %v1500
      %v1681 = vpop.f32.mrf.mxu0
      %v1682 = vadd.f32 0.0, %v1681
      %v1683 = vpop.f32.mrf.mxu0
      %1684 = vmatprep.mubr.f32.mxu0 0.0
      %1685 = vmatmul.mubr.f32.gmra.mxu0 %v1503
      %v1686 = vpop.f32.mrf.mxu0
      %v1687 = vadd.f32 0.0, %v1686
      %v1688 = vpop.f32.mrf.mxu0
      %1689 = vmatprep.mubr.f32.mxu0 0.0
      %1690 = vmatmul.mubr.f32.gmra.mxu0 %v1506
      %v1691 = vpop.f32.mrf.mxu0
      %v1692 = vadd.f32 0.0, %v1691
      %v1693 = vpop.f32.mrf.mxu0
      %1694 = vmatprep.mubr.f32.mxu0 0.0
      %1695 = vmatmul.mubr.f32.gmra.mxu0 %v1509
      %v1696 = vpop.f32.mrf.mxu0
      %v1697 = vadd.f32 0.0, %v1696
      %v1698 = vpop.f32.mrf.mxu0
      %1699 = vmatprep.mubr.f32.mxu0 0.0
      %1700 = vmatmul.mubr.f32.gmra.mxu0 %v1512
      %v1701 = vpop.f32.mrf.mxu0
      %v1702 = vadd.f32 0.0, %v1701
      %v1703 = vpop.f32.mrf.mxu0
      %1704 = vmatprep.mubr.f32.mxu0 0.0
      %1705 = vmatmul.mubr.f32.gmra.mxu0 %v1515
      %v1706 = vpop.f32.mrf.mxu0
      %v1707 = vadd.f32 0.0, %v1706
      %v1708 = vpop.f32.mrf.mxu0
      %1709 = vmatprep.mubr.f32.mxu0 0.0
      %1710 = vmatmul.mubr.f32.gmra.mxu0 %v1518
      %v1711 = vpop.f32.mrf.mxu0
      %v1712 = vadd.f32 0.0, %v1711
      %v1713 = vpop.f32.mrf.mxu0
      %1714 = vmatprep.mubr.f32.mxu0 0.0
      %1715 = vmatmul.mubr.f32.gmra.mxu0 %v1521
      %v1716 = vpop.f32.mrf.mxu0
      %v1717 = vadd.f32 0.0, %v1716
      %v1718 = vpop.f32.mrf.mxu0
      %1719 = vmatprep.mubr.f32.mxu0 0.0
      %1720 = vmatmul.mubr.f32.gmra.mxu0 %v1524
      %v1721 = vpop.f32.mrf.mxu0
      %v1722 = vadd.f32 0.0, %v1721
      %v1723 = vpop.f32.mrf.mxu0
      %1724 = vmatprep.mubr.f32.mxu0 0.0
      %1725 = vmatmul.mubr.f32.gmra.mxu0 %v1527
      %v1726 = vpop.f32.mrf.mxu0
      %v1727 = vadd.f32 0.0, %v1726
      %v1728 = vpop.f32.mrf.mxu0
      %1729 = vmatprep.mubr.f32.mxu0 0.0
      %1730 = vmatmul.mubr.f32.gmra.mxu0 %v1530
      %v1731 = vpop.f32.mrf.mxu0
      %v1732 = vadd.f32 0.0, %v1731
      %v1733 = vpop.f32.mrf.mxu0
      %1734 = vmatprep.mubr.f32.mxu0 0.0
      %1735 = vmatmul.mubr.f32.gmra.mxu0 %v1533
      %v1736 = vpop.f32.mrf.mxu0
      %v1737 = vadd.f32 0.0, %v1736
      %v1738 = vpop.f32.mrf.mxu0
      %1739 = vmatprep.mubr.f32.mxu0 0.0
      %1740 = vmatmul.mubr.f32.gmra.mxu0 %v1536
      %v1741 = vpop.f32.mrf.mxu0
      %v1742 = vadd.f32 0.0, %v1741
      %v1743 = vpop.f32.mrf.mxu0
      %1744 = vmatprep.mubr.f32.mxu0 0.0
      %1745 = vmatmul.mubr.f32.gmra.mxu0 %v1539
      %v1746 = vpop.f32.mrf.mxu0
      %v1747 = vadd.f32 0.0, %v1746
      %v1748 = vpop.f32.mrf.mxu0
      %1749 = vmatprep.mubr.f32.mxu0 0.0
      %1750 = vmatmul.mubr.f32.gmra.mxu0 %v1542
      %v1751 = vpop.f32.mrf.mxu0
      %v1752 = vadd.f32 0.0, %v1751
      %v1753 = vpop.f32.mrf.mxu0
      %1754 = vmatprep.mubr.f32.mxu0 0.0
      %1755 = vmatmul.mubr.f32.gmra.mxu0 %v1545
      %v1756 = vpop.f32.mrf.mxu0
      %v1757 = vadd.f32 0.0, %v1756
      %v1758 = vpop.f32.mrf.mxu0
      %1759 = vmatprep.mubr.f32.mxu0 0.0
      %1760 = vmatmul.mubr.f32.gmra.mxu0 %v1548
      %v1761 = vpop.f32.mrf.mxu0
      %v1762 = vadd.f32 0.0, %v1761
      %v1763 = vpop.f32.mrf.mxu0
      %1764 = vmatprep.mubr.f32.mxu0 0.0
      %1765 = vmatmul.mubr.f32.gmra.mxu0 %v1551
      %v1766 = vpop.f32.mrf.mxu0
      %v1767 = vadd.f32 0.0, %v1766
      %v1768 = vpop.f32.mrf.mxu0
      %1769 = vmatprep.mubr.f32.mxu0 0.0
      %1770 = vmatmul.mubr.f32.gmra.mxu0 %v1554
      %v1771 = vpop.f32.mrf.mxu0
      %v1772 = vadd.f32 0.0, %v1771
      %v1773 = vpop.f32.mrf.mxu0
      %1774 = vmatprep.mubr.f32.mxu0 0.0
      %1775 = vmatmul.mubr.f32.gmra.mxu0 %v1557
      %v1776 = vpop.f32.mrf.mxu0
      %v1777 = vadd.f32 0.0, %v1776
      %v1778 = vpop.f32.mrf.mxu0
      %1779 = vmatprep.mubr.f32.mxu0 0.0
      %1780 = vmatmul.mubr.f32.gmra.mxu0 %v1560
      %v1781 = vpop.f32.mrf.mxu0
      %v1782 = vadd.f32 0.0, %v1781
      %v1783 = vpop.f32.mrf.mxu0
      %1784 = vmatprep.mubr.f32.mxu0 0.0
      %1785 = vmatmul.mubr.f32.gmra.mxu0 %v1563
      %v1786 = vpop.f32.mrf.mxu0
      %v1787 = vadd.f32 0.0, %v1786
      %v1788 = vpop.f32.mrf.mxu0
      %1789 = vdwg.mxu0
      %v1791 = vsel %vm1173, %v1380, 0
      %v1794 = vsel %vm1173, %v1381, 0
      %v1797 = vsel %vm1173, %v1382, 0
      %v1800 = vsel %vm1173, %v1383, 0
      %v1803 = vsel %vm1173, %v1384, 0
      %v1806 = vsel %vm1173, %v1385, 0
      %v1809 = vsel %vm1173, %v1386, 0
      %v1812 = vsel %vm1173, %v1387, 0
      %v1815 = vsel %vm1173, %v1388, 0
      %v1818 = vsel %vm1173, %v1389, 0
      %v1821 = vsel %vm1173, %v1390, 0
      %v1824 = vsel %vm1173, %v1391, 0
      %v1827 = vsel %vm1173, %v1392, 0
      %v1830 = vsel %vm1173, %v1393, 0
      %v1833 = vsel %vm1173, %v1394, 0
      %v1836 = vsel %vm1173, %v1395, 0
      %v1839 = vsel %vm1173, %v1396, 0
      %v1842 = vsel %vm1173, %v1397, 0
      %v1845 = vsel %vm1173, %v1398, 0
      %v1848 = vsel %vm1173, %v1399, 0
      %v1851 = vsel %vm1173, %v1400, 0
      %v1854 = vsel %vm1173, %v1401, 0
      %v1857 = vsel %vm1173, %v1402, 0
      %v1860 = vsel %vm1173, %v1403, 0
      %v1863 = vsel %vm1173, %v1404, 0
      %v1866 = vsel %vm1173, %v1405, 0
      %v1869 = vsel %vm1173, %v1406, 0
      %v1872 = vsel %vm1173, %v1407, 0
      %v1875 = vsel %vm1173, %v1408, 0
      %v1878 = vsel %vm1173, %v1409, 0
      %v1881 = vsel %vm1173, %v1410, 0
      %v1884 = vsel %vm1173, %v1411, 0
      %1886 = vmatprep.subr.mxu0 0.0
      %1887 = vmatpush1.msra.mxu0 0.0
      %1888 = vmatprep.subr.mxu0 0.0
      %1889 = vmatpush1.msra.mxu0 0.0
      %1890 = vmatprep.subr.mxu0 0.0
      %1891 = vmatpush1.msra.mxu0 0.0
      %1892 = vmatprep.subr.mxu0 0.0
      %1893 = vmatpush1.msra.mxu0 0.0
      %1894 = vmatprep.subr.mxu0 0.0
      %1895 = vmatpush1.msra.mxu0 %v1423
      %1896 = vmatprep.subr.mxu0 0.0
      %1897 = vmatpush1.msra.mxu0 %v1422
      %1898 = vmatprep.subr.mxu0 0.0
      %1899 = vmatpush1.msra.mxu0 %v1421
      %1900 = vmatprep.subr.mxu0 0.0
      %1901 = vmatpush1.msra.mxu0 %v1420
      %1902 = vmatprep.subr.mxu0 0.0
      %1903 = vmatpush1.msra.mxu0 %v1419
      %1904 = vmatprep.subr.mxu0 0.0
      %1905 = vmatpush1.msra.mxu0 %v1418
      %1906 = vmatprep.subr.mxu0 0.0
      %1907 = vmatpush1.msra.mxu0 %v1417
      %1908 = vmatprep.subr.mxu0 0.0
      %1909 = vmatpush1.msra.mxu0 %v1416
      %1910 = vmatprep.subr.mxu0 0.0
      %1911 = vmatpush1.msra.mxu0 %v1415
      %1912 = vmatprep.subr.mxu0 0.0
      %1913 = vmatpush1.msra.mxu0 %v1414
      %1914 = vmatprep.subr.mxu0 0.0
      %1915 = vmatpush1.msra.mxu0 %v1413
      %1916 = vmatprep.subr.mxu0 0.0
      %1917 = vmatpush1.msra.mxu0 %v1412
      %1918 = vmatprep.subr.mxu0 0.0
      %1919 = vmatpush2.msra.mxu0 0.0
      %1920 = vmatprep.subr.mxu0 0.0
      %1921 = vmatpush2.msra.mxu0 0.0
      %1922 = vmatprep.subr.mxu0 0.0
      %1923 = vmatpush2.msra.mxu0 0.0
      %1924 = vmatprep.subr.mxu0 0.0
      %1925 = vmatpush2.msra.mxu0 0.0
      %1926 = vmatprep.subr.mxu0 0.0
      %1927 = vmatpush2.msra.mxu0 0.0
      %1928 = vmatprep.subr.mxu0 0.0
      %1929 = vmatpush2.msra.mxu0 0.0
      %1930 = vmatprep.subr.mxu0 0.0
      %1931 = vmatpush2.msra.mxu0 0.0
      %1932 = vmatprep.subr.mxu0 0.0
      %1933 = vmatpush2.msra.mxu0 0.0
      %1934 = vmatprep.subr.mxu0 0.0
      %1935 = vmatpush2.msra.mxu0 0.0
      %1936 = vmatprep.subr.mxu0 0.0
      %1937 = vmatpush2.msra.mxu0 0.0
      %1938 = vmatprep.subr.mxu0 0.0
      %1939 = vmatpush2.msra.mxu0 0.0
      %1940 = vmatprep.subr.mxu0 0.0
      %1941 = vmatpush2.msra.mxu0 0.0
      %1942 = vmatprep.subr.mxu0 0.0
      %1943 = vmatpush2.msra.mxu0 0.0
      %1944 = vmatprep.subr.mxu0 0.0
      %1945 = vmatpush2.msra.mxu0 0.0
      %1946 = vmatprep.subr.mxu0 0.0
      %1947 = vmatpush2.msra.mxu0 0.0
      %1948 = vmatprep.subr.mxu0 0.0
      %1949 = vmatpush2.msra.mxu0 0.0
      %1950 = vmatprep.mubr.f32.mxu0 0.0
      %1951 = vmatmul.mubr.f32.gmra.mxu0 %v1791
      %v1952 = vpop.f32.mrf.mxu0
      %v1953 = vadd.f32 %v1632, %v1952
      %v1954 = vpop.f32.mrf.mxu0
      %1955 = vmatprep.mubr.f32.mxu0 0.0
      %1956 = vmatmul.mubr.f32.gmra.mxu0 %v1794
      %v1957 = vpop.f32.mrf.mxu0
      %v1958 = vadd.f32 %v1637, %v1957
      %v1959 = vpop.f32.mrf.mxu0
      %1960 = vmatprep.mubr.f32.mxu0 0.0
      %1961 = vmatmul.mubr.f32.gmra.mxu0 %v1797
      %v1962 = vpop.f32.mrf.mxu0
      %v1963 = vadd.f32 %v1642, %v1962
      %v1964 = vpop.f32.mrf.mxu0
      %1965 = vmatprep.mubr.f32.mxu0 0.0
      %1966 = vmatmul.mubr.f32.gmra.mxu0 %v1800
      %v1967 = vpop.f32.mrf.mxu0
      %v1968 = vadd.f32 %v1647, %v1967
      %v1969 = vpop.f32.mrf.mxu0
      %1970 = vmatprep.mubr.f32.mxu0 0.0
      %1971 = vmatmul.mubr.f32.gmra.mxu0 %v1803
      %v1972 = vpop.f32.mrf.mxu0
      %v1973 = vadd.f32 %v1652, %v1972
      %v1974 = vpop.f32.mrf.mxu0
      %1975 = vmatprep.mubr.f32.mxu0 0.0
      %1976 = vmatmul.mubr.f32.gmra.mxu0 %v1806
      %v1977 = vpop.f32.mrf.mxu0
      %v1978 = vadd.f32 %v1657, %v1977
      %v1979 = vpop.f32.mrf.mxu0
      %1980 = vmatprep.mubr.f32.mxu0 0.0
      %1981 = vmatmul.mubr.f32.gmra.mxu0 %v1809
      %v1982 = vpop.f32.mrf.mxu0
      %v1983 = vadd.f32 %v1662, %v1982
      %v1984 = vpop.f32.mrf.mxu0
      %1985 = vmatprep.mubr.f32.mxu0 0.0
      %1986 = vmatmul.mubr.f32.gmra.mxu0 %v1812
      %v1987 = vpop.f32.mrf.mxu0
      %v1988 = vadd.f32 %v1667, %v1987
      %v1989 = vpop.f32.mrf.mxu0
      %1990 = vmatprep.mubr.f32.mxu0 0.0
      %1991 = vmatmul.mubr.f32.gmra.mxu0 %v1815
      %v1992 = vpop.f32.mrf.mxu0
      %v1993 = vadd.f32 %v1672, %v1992
      %v1994 = vpop.f32.mrf.mxu0
      %1995 = vmatprep.mubr.f32.mxu0 0.0
      %1996 = vmatmul.mubr.f32.gmra.mxu0 %v1818
      %v1997 = vpop.f32.mrf.mxu0
      %v1998 = vadd.f32 %v1677, %v1997
      %v1999 = vpop.f32.mrf.mxu0
      %2000 = vmatprep.mubr.f32.mxu0 0.0
      %2001 = vmatmul.mubr.f32.gmra.mxu0 %v1821
      %v2002 = vpop.f32.mrf.mxu0
      %v2003 = vadd.f32 %v1682, %v2002
      %v2004 = vpop.f32.mrf.mxu0
      %2005 = vmatprep.mubr.f32.mxu0 0.0
      %2006 = vmatmul.mubr.f32.gmra.mxu0 %v1824
      %v2007 = vpop.f32.mrf.mxu0
      %v2008 = vadd.f32 %v1687, %v2007
      %v2009 = vpop.f32.mrf.mxu0
      %2010 = vmatprep.mubr.f32.mxu0 0.0
      %2011 = vmatmul.mubr.f32.gmra.mxu0 %v1827
      %v2012 = vpop.f32.mrf.mxu0
      %v2013 = vadd.f32 %v1692, %v2012
      %v2014 = vpop.f32.mrf.mxu0
      %2015 = vmatprep.mubr.f32.mxu0 0.0
      %2016 = vmatmul.mubr.f32.gmra.mxu0 %v1830
      %v2017 = vpop.f32.mrf.mxu0
      %v2018 = vadd.f32 %v1697, %v2017
      %v2019 = vpop.f32.mrf.mxu0
      %2020 = vmatprep.mubr.f32.mxu0 0.0
      %2021 = vmatmul.mubr.f32.gmra.mxu0 %v1833
      %v2022 = vpop.f32.mrf.mxu0
      %v2023 = vadd.f32 %v1702, %v2022
      %v2024 = vpop.f32.mrf.mxu0
      %2025 = vmatprep.mubr.f32.mxu0 0.0
      %2026 = vmatmul.mubr.f32.gmra.mxu0 %v1836
      %v2027 = vpop.f32.mrf.mxu0
      %v2028 = vadd.f32 %v1707, %v2027
      %v2029 = vpop.f32.mrf.mxu0
      %2030 = vmatprep.mubr.f32.mxu0 0.0
      %2031 = vmatmul.mubr.f32.gmra.mxu0 %v1839
      %v2032 = vpop.f32.mrf.mxu0
      %v2033 = vadd.f32 %v1712, %v2032
      %v2034 = vpop.f32.mrf.mxu0
      %2035 = vmatprep.mubr.f32.mxu0 0.0
      %2036 = vmatmul.mubr.f32.gmra.mxu0 %v1842
      %v2037 = vpop.f32.mrf.mxu0
      %v2038 = vadd.f32 %v1717, %v2037
      %v2039 = vpop.f32.mrf.mxu0
      %2040 = vmatprep.mubr.f32.mxu0 0.0
      %2041 = vmatmul.mubr.f32.gmra.mxu0 %v1845
      %v2042 = vpop.f32.mrf.mxu0
      %v2043 = vadd.f32 %v1722, %v2042
      %v2044 = vpop.f32.mrf.mxu0
      %2045 = vmatprep.mubr.f32.mxu0 0.0
      %2046 = vmatmul.mubr.f32.gmra.mxu0 %v1848
      %v2047 = vpop.f32.mrf.mxu0
      %v2048 = vadd.f32 %v1727, %v2047
      %v2049 = vpop.f32.mrf.mxu0
      %2050 = vmatprep.mubr.f32.mxu0 0.0
      %2051 = vmatmul.mubr.f32.gmra.mxu0 %v1851
      %v2052 = vpop.f32.mrf.mxu0
      %v2053 = vadd.f32 %v1732, %v2052
      %v2054 = vpop.f32.mrf.mxu0
      %2055 = vmatprep.mubr.f32.mxu0 0.0
      %2056 = vmatmul.mubr.f32.gmra.mxu0 %v1854
      %v2057 = vpop.f32.mrf.mxu0
      %v2058 = vadd.f32 %v1737, %v2057
      %v2059 = vpop.f32.mrf.mxu0
      %2060 = vmatprep.mubr.f32.mxu0 0.0
      %2061 = vmatmul.mubr.f32.gmra.mxu0 %v1857
      %v2062 = vpop.f32.mrf.mxu0
      %v2063 = vadd.f32 %v1742, %v2062
      %v2064 = vpop.f32.mrf.mxu0
      %2065 = vmatprep.mubr.f32.mxu0 0.0
      %2066 = vmatmul.mubr.f32.gmra.mxu0 %v1860
      %v2067 = vpop.f32.mrf.mxu0
      %v2068 = vadd.f32 %v1747, %v2067
      %v2069 = vpop.f32.mrf.mxu0
      %2070 = vmatprep.mubr.f32.mxu0 0.0
      %2071 = vmatmul.mubr.f32.gmra.mxu0 %v1863
      %v2072 = vpop.f32.mrf.mxu0
      %v2073 = vadd.f32 %v1752, %v2072
      %v2074 = vpop.f32.mrf.mxu0
      %2075 = vmatprep.mubr.f32.mxu0 0.0
      %2076 = vmatmul.mubr.f32.gmra.mxu0 %v1866
      %v2077 = vpop.f32.mrf.mxu0
      %v2078 = vadd.f32 %v1757, %v2077
      %v2079 = vpop.f32.mrf.mxu0
      %2080 = vmatprep.mubr.f32.mxu0 0.0
      %2081 = vmatmul.mubr.f32.gmra.mxu0 %v1869
      %v2082 = vpop.f32.mrf.mxu0
      %v2083 = vadd.f32 %v1762, %v2082
      %v2084 = vpop.f32.mrf.mxu0
      %2085 = vmatprep.mubr.f32.mxu0 0.0
      %2086 = vmatmul.mubr.f32.gmra.mxu0 %v1872
      %v2087 = vpop.f32.mrf.mxu0
      %v2088 = vadd.f32 %v1767, %v2087
      %v2089 = vpop.f32.mrf.mxu0
      %2090 = vmatprep.mubr.f32.mxu0 0.0
      %2091 = vmatmul.mubr.f32.gmra.mxu0 %v1875
      %v2092 = vpop.f32.mrf.mxu0
      %v2093 = vadd.f32 %v1772, %v2092
      %v2094 = vpop.f32.mrf.mxu0
      %2095 = vmatprep.mubr.f32.mxu0 0.0
      %2096 = vmatmul.mubr.f32.gmra.mxu0 %v1878
      %v2097 = vpop.f32.mrf.mxu0
      %v2098 = vadd.f32 %v1777, %v2097
      %v2099 = vpop.f32.mrf.mxu0
      %2100 = vmatprep.mubr.f32.mxu0 0.0
      %2101 = vmatmul.mubr.f32.gmra.mxu0 %v1881
      %v2102 = vpop.f32.mrf.mxu0
      %v2103 = vadd.f32 %v1782, %v2102
      %v2104 = vpop.f32.mrf.mxu0
      %2105 = vmatprep.mubr.f32.mxu0 0.0
      %2106 = vmatmul.mubr.f32.gmra.mxu0 %v1884
      %v2107 = vpop.f32.mrf.mxu0
      %v2108 = vadd.f32 %v1787, %v2107
      %v2109 = vpop.f32.mrf.mxu0
      %2110 = vdwg.mxu0
      %s2111 = scalar_lea.vmem [#allocation2], 32
      %v2112 = vld [vmem:[%s2111] sm:$0xff]
      %v2113 = vld [vmem:[%s2111 + $0x8] sm:$0xff]
      %v2114 = vld [vmem:[%s2111 + $0x10] sm:$0xff]
      %v2115 = vld [vmem:[%s2111 + $0x18] sm:$0xff]
      %v2116 = vld [vmem:[%s2111 + $0x20] sm:$0xff]
      %v2117 = vld [vmem:[%s2111 + $0x28] sm:$0xff]
      %v2118 = vld [vmem:[%s2111 + $0x30] sm:$0xff]
      %v2119 = vld [vmem:[%s2111 + $0x38] sm:$0xff]
      %v2120 = vld [vmem:[%s2111 + $0x40] sm:$0xff]
      %v2121 = vld [vmem:[%s2111 + $0x48] sm:$0xff]
      %v2122 = vld [vmem:[%s2111 + $0x50] sm:$0xff]
      %v2123 = vld [vmem:[%s2111 + $0x58] sm:$0xff]
      %v2124 = vld [vmem:[%s2111 + $0x60] sm:$0xff]
      %v2125 = vld [vmem:[%s2111 + $0x68] sm:$0xff]
      %v2126 = vld [vmem:[%s2111 + $0x70] sm:$0xff]
      %v2127 = vld [vmem:[%s2111 + $0x78] sm:$0xff]
      %v2128 = vld [vmem:[%s2111 + $0x80] sm:$0xff]
      %v2129 = vld [vmem:[%s2111 + $0x88] sm:$0xff]
      %v2130 = vld [vmem:[%s2111 + $0x90] sm:$0xff]
      %v2131 = vld [vmem:[%s2111 + $0x98] sm:$0xff]
      %v2132 = vld [vmem:[%s2111 + $0xa0] sm:$0xff]
      %v2133 = vld [vmem:[%s2111 + $0xa8] sm:$0xff]
      %v2134 = vld [vmem:[%s2111 + $0xb0] sm:$0xff]
      %v2135 = vld [vmem:[%s2111 + $0xb8] sm:$0xff]
      %v2136 = vld [vmem:[%s2111 + $0xc0] sm:$0xff]
      %v2137 = vld [vmem:[%s2111 + $0xc8] sm:$0xff]
      %v2138 = vld [vmem:[%s2111 + $0xd0] sm:$0xff]
      %v2139 = vld [vmem:[%s2111 + $0xd8] sm:$0xff]
      %v2140 = vld [vmem:[%s2111 + $0xe0] sm:$0xff]
      %v2141 = vld [vmem:[%s2111 + $0xe8] sm:$0xff]
      %v2142 = vld [vmem:[%s2111 + $0xf0] sm:$0xff]
      %v2143 = vld [vmem:[%s2111 + $0xf8] sm:$0xff]
      %s2144 = scalar_lea.vmem %s4, 192
      %v2145 = vld [vmem:[%s2144] sm:$0xff]
      %v2146 = vld [vmem:[%s2144 + $0x8] sm:$0xff]
      %v2147 = vld [vmem:[%s2144 + $0x10] sm:$0xff]
      %v2148 = vld [vmem:[%s2144 + $0x18] sm:$0xff]
      %v2149 = vld [vmem:[%s2144 + $0x20] sm:$0xff]
      %v2150 = vld [vmem:[%s2144 + $0x28] sm:$0xff]
      %v2151 = vld [vmem:[%s2144 + $0x30] sm:$0xff]
      %v2152 = vld [vmem:[%s2144 + $0x38] sm:$0xff]
      %v2153 = vld [vmem:[%s2144 + $0x40] sm:$0xff]
      %v2154 = vld [vmem:[%s2144 + $0x48] sm:$0xff]
      %v2155 = vld [vmem:[%s2144 + $0x50] sm:$0xff]
      %v2156 = vld [vmem:[%s2144 + $0x58] sm:$0xff]
      %v2158 = vsel %vm1173, %v2112, 0
      %v2161 = vsel %vm1173, %v2113, 0
      %v2164 = vsel %vm1173, %v2114, 0
      %v2167 = vsel %vm1173, %v2115, 0
      %v2170 = vsel %vm1173, %v2116, 0
      %v2173 = vsel %vm1173, %v2117, 0
      %v2176 = vsel %vm1173, %v2118, 0
      %v2179 = vsel %vm1173, %v2119, 0
      %v2182 = vsel %vm1173, %v2120, 0
      %v2185 = vsel %vm1173, %v2121, 0
      %v2188 = vsel %vm1173, %v2122, 0
      %v2191 = vsel %vm1173, %v2123, 0
      %v2194 = vsel %vm1173, %v2124, 0
      %v2197 = vsel %vm1173, %v2125, 0
      %v2200 = vsel %vm1173, %v2126, 0
      %v2203 = vsel %vm1173, %v2127, 0
      %v2206 = vsel %vm1173, %v2128, 0
      %v2209 = vsel %vm1173, %v2129, 0
      %v2212 = vsel %vm1173, %v2130, 0
      %v2215 = vsel %vm1173, %v2131, 0
      %v2218 = vsel %vm1173, %v2132, 0
      %v2221 = vsel %vm1173, %v2133, 0
      %v2224 = vsel %vm1173, %v2134, 0
      %v2227 = vsel %vm1173, %v2135, 0
      %v2230 = vsel %vm1173, %v2136, 0
      %v2233 = vsel %vm1173, %v2137, 0
      %v2236 = vsel %vm1173, %v2138, 0
      %v2239 = vsel %vm1173, %v2139, 0
      %v2242 = vsel %vm1173, %v2140, 0
      %v2245 = vsel %vm1173, %v2141, 0
      %v2248 = vsel %vm1173, %v2142, 0
      %v2251 = vsel %vm1173, %v2143, 0
      %2253 = vmatprep.subr.mxu0 0.0
      %2254 = vmatpush1.msra.mxu0 0.0
      %2255 = vmatprep.subr.mxu0 0.0
      %2256 = vmatpush1.msra.mxu0 0.0
      %2257 = vmatprep.subr.mxu0 0.0
      %2258 = vmatpush1.msra.mxu0 0.0
      %2259 = vmatprep.subr.mxu0 0.0
      %2260 = vmatpush1.msra.mxu0 0.0
      %2261 = vmatprep.subr.mxu0 0.0
      %2262 = vmatpush1.msra.mxu0 %v2156
      %2263 = vmatprep.subr.mxu0 0.0
      %2264 = vmatpush1.msra.mxu0 %v2155
      %2265 = vmatprep.subr.mxu0 0.0
      %2266 = vmatpush1.msra.mxu0 %v2154
      %2267 = vmatprep.subr.mxu0 0.0
      %2268 = vmatpush1.msra.mxu0 %v2153
      %2269 = vmatprep.subr.mxu0 0.0
      %2270 = vmatpush1.msra.mxu0 %v2152
      %2271 = vmatprep.subr.mxu0 0.0
      %2272 = vmatpush1.msra.mxu0 %v2151
      %2273 = vmatprep.subr.mxu0 0.0
      %2274 = vmatpush1.msra.mxu0 %v2150
      %2275 = vmatprep.subr.mxu0 0.0
      %2276 = vmatpush1.msra.mxu0 %v2149
      %2277 = vmatprep.subr.mxu0 0.0
      %2278 = vmatpush1.msra.mxu0 %v2148
      %2279 = vmatprep.subr.mxu0 0.0
      %2280 = vmatpush1.msra.mxu0 %v2147
      %2281 = vmatprep.subr.mxu0 0.0
      %2282 = vmatpush1.msra.mxu0 %v2146
      %2283 = vmatprep.subr.mxu0 0.0
      %2284 = vmatpush1.msra.mxu0 %v2145
      %2285 = vmatprep.subr.mxu0 0.0
      %2286 = vmatpush2.msra.mxu0 0.0
      %2287 = vmatprep.subr.mxu0 0.0
      %2288 = vmatpush2.msra.mxu0 0.0
      %2289 = vmatprep.subr.mxu0 0.0
      %2290 = vmatpush2.msra.mxu0 0.0
      %2291 = vmatprep.subr.mxu0 0.0
      %2292 = vmatpush2.msra.mxu0 0.0
      %2293 = vmatprep.subr.mxu0 0.0
      %2294 = vmatpush2.msra.mxu0 0.0
      %2295 = vmatprep.subr.mxu0 0.0
      %2296 = vmatpush2.msra.mxu0 0.0
      %2297 = vmatprep.subr.mxu0 0.0
      %2298 = vmatpush2.msra.mxu0 0.0
      %2299 = vmatprep.subr.mxu0 0.0
      %2300 = vmatpush2.msra.mxu0 0.0
      %2301 = vmatprep.subr.mxu0 0.0
      %2302 = vmatpush2.msra.mxu0 0.0
      %2303 = vmatprep.subr.mxu0 0.0
      %2304 = vmatpush2.msra.mxu0 0.0
      %2305 = vmatprep.subr.mxu0 0.0
      %2306 = vmatpush2.msra.mxu0 0.0
      %2307 = vmatprep.subr.mxu0 0.0
      %2308 = vmatpush2.msra.mxu0 0.0
      %2309 = vmatprep.subr.mxu0 0.0
      %2310 = vmatpush2.msra.mxu0 0.0
      %2311 = vmatprep.subr.mxu0 0.0
      %2312 = vmatpush2.msra.mxu0 0.0
      %2313 = vmatprep.subr.mxu0 0.0
      %2314 = vmatpush2.msra.mxu0 0.0
      %2315 = vmatprep.subr.mxu0 0.0
      %2316 = vmatpush2.msra.mxu0 0.0
      %2317 = vmatprep.mubr.f32.mxu0 0.0
      %2318 = vmatmul.mubr.f32.gmra.mxu0 %v2158
      %v2319 = vpop.f32.mrf.mxu0
      %v2320 = vadd.f32 0.0, %v2319
      %v2321 = vpop.f32.mrf.mxu0
      %2322 = vmatprep.mubr.f32.mxu0 0.0
      %2323 = vmatmul.mubr.f32.gmra.mxu0 %v2161
      %v2324 = vpop.f32.mrf.mxu0
      %v2325 = vadd.f32 0.0, %v2324
      %v2326 = vpop.f32.mrf.mxu0
      %2327 = vmatprep.mubr.f32.mxu0 0.0
      %2328 = vmatmul.mubr.f32.gmra.mxu0 %v2164
      %v2329 = vpop.f32.mrf.mxu0
      %v2330 = vadd.f32 0.0, %v2329
      %v2331 = vpop.f32.mrf.mxu0
      %2332 = vmatprep.mubr.f32.mxu0 0.0
      %2333 = vmatmul.mubr.f32.gmra.mxu0 %v2167
      %v2334 = vpop.f32.mrf.mxu0
      %v2335 = vadd.f32 0.0, %v2334
      %v2336 = vpop.f32.mrf.mxu0
      %2337 = vmatprep.mubr.f32.mxu0 0.0
      %2338 = vmatmul.mubr.f32.gmra.mxu0 %v2170
      %v2339 = vpop.f32.mrf.mxu0
      %v2340 = vadd.f32 0.0, %v2339
      %v2341 = vpop.f32.mrf.mxu0
      %2342 = vmatprep.mubr.f32.mxu0 0.0
      %2343 = vmatmul.mubr.f32.gmra.mxu0 %v2173
      %v2344 = vpop.f32.mrf.mxu0
      %v2345 = vadd.f32 0.0, %v2344
      %v2346 = vpop.f32.mrf.mxu0
      %2347 = vmatprep.mubr.f32.mxu0 0.0
      %2348 = vmatmul.mubr.f32.gmra.mxu0 %v2176
      %v2349 = vpop.f32.mrf.mxu0
      %v2350 = vadd.f32 0.0, %v2349
      %v2351 = vpop.f32.mrf.mxu0
      %2352 = vmatprep.mubr.f32.mxu0 0.0
      %2353 = vmatmul.mubr.f32.gmra.mxu0 %v2179
      %v2354 = vpop.f32.mrf.mxu0
      %v2355 = vadd.f32 0.0, %v2354
      %v2356 = vpop.f32.mrf.mxu0
      %2357 = vmatprep.mubr.f32.mxu0 0.0
      %2358 = vmatmul.mubr.f32.gmra.mxu0 %v2182
      %v2359 = vpop.f32.mrf.mxu0
      %v2360 = vadd.f32 0.0, %v2359
      %v2361 = vpop.f32.mrf.mxu0
      %2362 = vmatprep.mubr.f32.mxu0 0.0
      %2363 = vmatmul.mubr.f32.gmra.mxu0 %v2185
      %v2364 = vpop.f32.mrf.mxu0
      %v2365 = vadd.f32 0.0, %v2364
      %v2366 = vpop.f32.mrf.mxu0
      %2367 = vmatprep.mubr.f32.mxu0 0.0
      %2368 = vmatmul.mubr.f32.gmra.mxu0 %v2188
      %v2369 = vpop.f32.mrf.mxu0
      %v2370 = vadd.f32 0.0, %v2369
      %v2371 = vpop.f32.mrf.mxu0
      %2372 = vmatprep.mubr.f32.mxu0 0.0
      %2373 = vmatmul.mubr.f32.gmra.mxu0 %v2191
      %v2374 = vpop.f32.mrf.mxu0
      %v2375 = vadd.f32 0.0, %v2374
      %v2376 = vpop.f32.mrf.mxu0
      %2377 = vmatprep.mubr.f32.mxu0 0.0
      %2378 = vmatmul.mubr.f32.gmra.mxu0 %v2194
      %v2379 = vpop.f32.mrf.mxu0
      %v2380 = vadd.f32 0.0, %v2379
      %v2381 = vpop.f32.mrf.mxu0
      %2382 = vmatprep.mubr.f32.mxu0 0.0
      %2383 = vmatmul.mubr.f32.gmra.mxu0 %v2197
      %v2384 = vpop.f32.mrf.mxu0
      %v2385 = vadd.f32 0.0, %v2384
      %v2386 = vpop.f32.mrf.mxu0
      %2387 = vmatprep.mubr.f32.mxu0 0.0
      %2388 = vmatmul.mubr.f32.gmra.mxu0 %v2200
      %v2389 = vpop.f32.mrf.mxu0
      %v2390 = vadd.f32 0.0, %v2389
      %v2391 = vpop.f32.mrf.mxu0
      %2392 = vmatprep.mubr.f32.mxu0 0.0
      %2393 = vmatmul.mubr.f32.gmra.mxu0 %v2203
      %v2394 = vpop.f32.mrf.mxu0
      %v2395 = vadd.f32 0.0, %v2394
      %v2396 = vpop.f32.mrf.mxu0
      %2397 = vmatprep.mubr.f32.mxu0 0.0
      %2398 = vmatmul.mubr.f32.gmra.mxu0 %v2206
      %v2399 = vpop.f32.mrf.mxu0
      %v2400 = vadd.f32 0.0, %v2399
      %v2401 = vpop.f32.mrf.mxu0
      %2402 = vmatprep.mubr.f32.mxu0 0.0
      %2403 = vmatmul.mubr.f32.gmra.mxu0 %v2209
      %v2404 = vpop.f32.mrf.mxu0
      %v2405 = vadd.f32 0.0, %v2404
      %v2406 = vpop.f32.mrf.mxu0
      %2407 = vmatprep.mubr.f32.mxu0 0.0
      %2408 = vmatmul.mubr.f32.gmra.mxu0 %v2212
      %v2409 = vpop.f32.mrf.mxu0
      %v2410 = vadd.f32 0.0, %v2409
      %v2411 = vpop.f32.mrf.mxu0
      %2412 = vmatprep.mubr.f32.mxu0 0.0
      %2413 = vmatmul.mubr.f32.gmra.mxu0 %v2215
      %v2414 = vpop.f32.mrf.mxu0
      %v2415 = vadd.f32 0.0, %v2414
      %v2416 = vpop.f32.mrf.mxu0
      %2417 = vmatprep.mubr.f32.mxu0 0.0
      %2418 = vmatmul.mubr.f32.gmra.mxu0 %v2218
      %v2419 = vpop.f32.mrf.mxu0
      %v2420 = vadd.f32 0.0, %v2419
      %v2421 = vpop.f32.mrf.mxu0
      %2422 = vmatprep.mubr.f32.mxu0 0.0
      %2423 = vmatmul.mubr.f32.gmra.mxu0 %v2221
      %v2424 = vpop.f32.mrf.mxu0
      %v2425 = vadd.f32 0.0, %v2424
      %v2426 = vpop.f32.mrf.mxu0
      %2427 = vmatprep.mubr.f32.mxu0 0.0
      %2428 = vmatmul.mubr.f32.gmra.mxu0 %v2224
      %v2429 = vpop.f32.mrf.mxu0
      %v2430 = vadd.f32 0.0, %v2429
      %v2431 = vpop.f32.mrf.mxu0
      %2432 = vmatprep.mubr.f32.mxu0 0.0
      %2433 = vmatmul.mubr.f32.gmra.mxu0 %v2227
      %v2434 = vpop.f32.mrf.mxu0
      %v2435 = vadd.f32 0.0, %v2434
      %v2436 = vpop.f32.mrf.mxu0
      %2437 = vmatprep.mubr.f32.mxu0 0.0
      %2438 = vmatmul.mubr.f32.gmra.mxu0 %v2230
      %v2439 = vpop.f32.mrf.mxu0
      %v2440 = vadd.f32 0.0, %v2439
      %v2441 = vpop.f32.mrf.mxu0
      %2442 = vmatprep.mubr.f32.mxu0 0.0
      %2443 = vmatmul.mubr.f32.gmra.mxu0 %v2233
      %v2444 = vpop.f32.mrf.mxu0
      %v2445 = vadd.f32 0.0, %v2444
      %v2446 = vpop.f32.mrf.mxu0
      %2447 = vmatprep.mubr.f32.mxu0 0.0
      %2448 = vmatmul.mubr.f32.gmra.mxu0 %v2236
      %v2449 = vpop.f32.mrf.mxu0
      %v2450 = vadd.f32 0.0, %v2449
      %v2451 = vpop.f32.mrf.mxu0
      %2452 = vmatprep.mubr.f32.mxu0 0.0
      %2453 = vmatmul.mubr.f32.gmra.mxu0 %v2239
      %v2454 = vpop.f32.mrf.mxu0
      %v2455 = vadd.f32 0.0, %v2454
      %v2456 = vpop.f32.mrf.mxu0
      %2457 = vmatprep.mubr.f32.mxu0 0.0
      %2458 = vmatmul.mubr.f32.gmra.mxu0 %v2242
      %v2459 = vpop.f32.mrf.mxu0
      %v2460 = vadd.f32 0.0, %v2459
      %v2461 = vpop.f32.mrf.mxu0
      %2462 = vmatprep.mubr.f32.mxu0 0.0
      %2463 = vmatmul.mubr.f32.gmra.mxu0 %v2245
      %v2464 = vpop.f32.mrf.mxu0
      %v2465 = vadd.f32 0.0, %v2464
      %v2466 = vpop.f32.mrf.mxu0
      %2467 = vmatprep.mubr.f32.mxu0 0.0
      %2468 = vmatmul.mubr.f32.gmra.mxu0 %v2248
      %v2469 = vpop.f32.mrf.mxu0
      %v2470 = vadd.f32 0.0, %v2469
      %v2471 = vpop.f32.mrf.mxu0
      %2472 = vmatprep.mubr.f32.mxu0 0.0
      %2473 = vmatmul.mubr.f32.gmra.mxu0 %v2251
      %v2474 = vpop.f32.mrf.mxu0
      %v2475 = vadd.f32 0.0, %v2474
      %v2476 = vpop.f32.mrf.mxu0
      %2477 = vdwg.mxu0
      %v2478 = vadd.f32 %v1953, %v2320
      %v2479 = vadd.f32 %v1958, %v2325
      %v2480 = vadd.f32 %v1963, %v2330
      %v2481 = vadd.f32 %v1968, %v2335
      %v2482 = vadd.f32 %v1973, %v2340
      %v2483 = vadd.f32 %v1978, %v2345
      %v2484 = vadd.f32 %v1983, %v2350
      %v2485 = vadd.f32 %v1988, %v2355
      %v2486 = vadd.f32 %v1993, %v2360
      %v2487 = vadd.f32 %v1998, %v2365
      %v2488 = vadd.f32 %v2003, %v2370
      %v2489 = vadd.f32 %v2008, %v2375
      %v2490 = vadd.f32 %v2013, %v2380
      %v2491 = vadd.f32 %v2018, %v2385
      %v2492 = vadd.f32 %v2023, %v2390
      %v2493 = vadd.f32 %v2028, %v2395
      %v2494 = vadd.f32 %v2033, %v2400
      %v2495 = vadd.f32 %v2038, %v2405
      %v2496 = vadd.f32 %v2043, %v2410
      %v2497 = vadd.f32 %v2048, %v2415
      %v2498 = vadd.f32 %v2053, %v2420
      %v2499 = vadd.f32 %v2058, %v2425
      %v2500 = vadd.f32 %v2063, %v2430
      %v2501 = vadd.f32 %v2068, %v2435
      %v2502 = vadd.f32 %v2073, %v2440
      %v2503 = vadd.f32 %v2078, %v2445
      %v2504 = vadd.f32 %v2083, %v2450
      %v2505 = vadd.f32 %v2088, %v2455
      %v2506 = vadd.f32 %v2093, %v2460
      %v2507 = vadd.f32 %v2098, %v2465
      %v2508 = vadd.f32 %v2103, %v2470
      %v2509 = vadd.f32 %v2108, %v2475
      %v2510 = vld [vmem:[%s5] sm:$0x1]
      %v2512 = vlaneseq
      %v2513 = vshrl.u32 %v2512, 7
      %v2514 = vsub.s32 0, %v2513
      %v2515 = vrot.slane %v2510, %v2514
      %v2517 = vadd.f32 %v2478, %v2515
      %v2518 = vadd.f32 %v2479, %v2515
      %v2519 = vadd.f32 %v2480, %v2515
      %v2520 = vadd.f32 %v2481, %v2515
      %v2521 = vadd.f32 %v2482, %v2515
      %v2522 = vadd.f32 %v2483, %v2515
      %v2523 = vadd.f32 %v2484, %v2515
      %v2524 = vadd.f32 %v2485, %v2515
      %v2525 = vadd.f32 %v2486, %v2515
      %v2526 = vadd.f32 %v2487, %v2515
      %v2527 = vadd.f32 %v2488, %v2515
      %v2528 = vadd.f32 %v2489, %v2515
      %v2529 = vadd.f32 %v2490, %v2515
      %v2530 = vadd.f32 %v2491, %v2515
      %v2531 = vadd.f32 %v2492, %v2515
      %v2532 = vadd.f32 %v2493, %v2515
      %v2533 = vadd.f32 %v2494, %v2515
      %v2534 = vadd.f32 %v2495, %v2515
      %v2535 = vadd.f32 %v2496, %v2515
      %v2536 = vadd.f32 %v2497, %v2515
      %v2537 = vadd.f32 %v2498, %v2515
      %v2538 = vadd.f32 %v2499, %v2515
      %v2539 = vadd.f32 %v2500, %v2515
      %v2540 = vadd.f32 %v2501, %v2515
      %v2541 = vadd.f32 %v2502, %v2515
      %v2542 = vadd.f32 %v2503, %v2515
      %v2543 = vadd.f32 %v2504, %v2515
      %v2544 = vadd.f32 %v2505, %v2515
      %v2545 = vadd.f32 %v2506, %v2515
      %v2546 = vadd.f32 %v2507, %v2515
      %v2547 = vadd.f32 %v2508, %v2515
      %v2548 = vadd.f32 %v2509, %v2515
      %2549 = vst.msk [vmem:[%s321] sm:$0xff] %vm1106, %v2517
      %2550 = vst.msk [vmem:[%s321 + $0x8] sm:$0xff] %vm1106, %v2518
      %2551 = vst.msk [vmem:[%s321 + $0x10] sm:$0xff] %vm1106, %v2519
      %2552 = vst.msk [vmem:[%s321 + $0x18] sm:$0xff] %vm1106, %v2520
      %2553 = vst.msk [vmem:[%s321 + $0x20] sm:$0xff] %vm1106, %v2521
      %2554 = vst.msk [vmem:[%s321 + $0x28] sm:$0xff] %vm1106, %v2522
      %2555 = vst.msk [vmem:[%s321 + $0x30] sm:$0xff] %vm1106, %v2523
      %2556 = vst.msk [vmem:[%s321 + $0x38] sm:$0xff] %vm1106, %v2524
      %2557 = vst.msk [vmem:[%s321 + $0x40] sm:$0xff] %vm1106, %v2525
      %2558 = vst.msk [vmem:[%s321 + $0x48] sm:$0xff] %vm1106, %v2526
      %2559 = vst.msk [vmem:[%s321 + $0x50] sm:$0xff] %vm1106, %v2527
      %2560 = vst.msk [vmem:[%s321 + $0x58] sm:$0xff] %vm1106, %v2528
      %2561 = vst.msk [vmem:[%s321 + $0x60] sm:$0xff] %vm1106, %v2529
      %2562 = vst.msk [vmem:[%s321 + $0x68] sm:$0xff] %vm1106, %v2530
      %2563 = vst.msk [vmem:[%s321 + $0x70] sm:$0xff] %vm1106, %v2531
      %2564 = vst.msk [vmem:[%s321 + $0x78] sm:$0xff] %vm1106, %v2532
      %2565 = vst.msk [vmem:[%s321 + $0x80] sm:$0xff] %vm1106, %v2533
      %2566 = vst.msk [vmem:[%s321 + $0x88] sm:$0xff] %vm1106, %v2534
      %2567 = vst.msk [vmem:[%s321 + $0x90] sm:$0xff] %vm1106, %v2535
      %2568 = vst.msk [vmem:[%s321 + $0x98] sm:$0xff] %vm1106, %v2536
      %2569 = vst.msk [vmem:[%s321 + $0xa0] sm:$0xff] %vm1106, %v2537
      %2570 = vst.msk [vmem:[%s321 + $0xa8] sm:$0xff] %vm1106, %v2538
      %2571 = vst.msk [vmem:[%s321 + $0xb0] sm:$0xff] %vm1106, %v2539
      %2572 = vst.msk [vmem:[%s321 + $0xb8] sm:$0xff] %vm1106, %v2540
      %2573 = vst.msk [vmem:[%s321 + $0xc0] sm:$0xff] %vm1106, %v2541
      %2574 = vst.msk [vmem:[%s321 + $0xc8] sm:$0xff] %vm1106, %v2542
      %2575 = vst.msk [vmem:[%s321 + $0xd0] sm:$0xff] %vm1106, %v2543
      %2576 = vst.msk [vmem:[%s321 + $0xd8] sm:$0xff] %vm1106, %v2544
      %2577 = vst.msk [vmem:[%s321 + $0xe0] sm:$0xff] %vm1106, %v2545
      %2578 = vst.msk [vmem:[%s321 + $0xe8] sm:$0xff] %vm1106, %v2546
      %2579 = vst.msk [vmem:[%s321 + $0xf0] sm:$0xff] %vm1106, %v2547
      %2580 = vst.msk [vmem:[%s321 + $0xf8] sm:$0xff] %vm1106, %v2548
      %p2581 = scmp.lt.s32.totalorder %s21, 1
      %s2582 = scalar_select %p2581, %s21, 1
      %p2583 = scmp.lt.s32.totalorder %s22, 0
      %s2584 = scalar_select %p2583, %s22, 0
      %s2585 = smul.addr %s2584, 32
      %s2586 = smul.addr %s2582, 32
      %s2587 = sadd.s32 %s2585, %s2586
      %s2588 = smul.addr %s2587, 8
      %s2589 = scalar_lea.vmem %s6, %s2588
      // Predicated region
      $region45: #{tpu_custom_call.1} parent=43 // pred_check
        %p2590 = pneg %p189
      $region46: #{tpu_custom_call.1} parent=43 // pred_check_branch
        %2592 = sbr.rel (%p2590) target = $region48
      $region47: #{tpu_custom_call.1} parent=43 // pred_region
        _
      $region48: #{tpu_custom_call.1} parent=43 // pred_fallthru
        _
    $region44: #{tpu_custom_call.1} parent=5 // pred_fallthru
      _
    %p2593 = scmp.le.s32.totalorder 2, %s12
    // Predicated region
    $region49: #{tpu_custom_call.1} parent=5 // pred_check
      %p2594 = pneg %p2593
    $region50: #{tpu_custom_call.1} parent=5 // pred_check_branch
      %2596 = sbr.rel (%p2594) target = $region52
    $region51: #{tpu_custom_call.1} parent=5 // pred_region
      %s2597 = ssub.s32 %s12, 2
      // Predicated region
      $region53: #{tpu_custom_call.1} parent=51 // pred_check
        %p2598 = pneg %p195
      $region54: #{tpu_custom_call.1} parent=51 // pred_check_branch
        %2600 = sbr.rel (%p2598) target = $region56
      $region55: #{tpu_custom_call.1} parent=51 // pred_region
        %p2601 = scmp.lt.s32.totalorder %s23, 1
        %s2602 = scalar_select %p2601, %s23, 1
        %p2603 = scmp.lt.s32.totalorder %s24, 0
        %s2604 = scalar_select %p2603, %s24, 0
        %s2605 = smul.addr %s2604, 32
        %s2606 = smul.addr %s2602, 32
        %s2607 = sadd.s32 %s2605, %s2606
        %s2608 = smul.addr %s2607, 8
        %s2609 = scalar_lea.vmem %s6, %s2608
      $region56: #{tpu_custom_call.1} parent=51 // pred_fallthru
        _
    $region52: #{tpu_custom_call.1} parent=5 // pred_fallthru
      _
  $region6: #{tpu_custom_call.1} parent=0 // loop_footer
    %s16 = sadd.s32 1, %s12
  $region7: #{tpu_custom_call.1} parent=0 // loop_footer_branch
    %11 = sbr.rel target = $region3
  $region8: #{tpu_custom_call.1} parent=0 // loop_exit
    _

</llo_original>
